<compile_context>
chip_gen: v6e
topology: v6e:2x2x1
jax: 0.10.0
libtpu: 0.0.40
codegen_flags: <defaults>
</compile_context>

<pallas_src>
import functools

import numpy as np

import jax
import jax.numpy as jnp
from jax.experimental import pallas as pl
from jax.experimental.pallas import tpu as pltpu


# ----------------------------------------------------------------------------
# Pallas kernel: fused 3x3 "same" conv on TB padded tiles via 3 banded matmuls
# ----------------------------------------------------------------------------
def _make_conv_kernel(h, w, c, cout, wb, tb):
    """Kernel closure over static tile geometry.

    x_ref: (tb, h+2, (w+2)*c)      raw zero-padded tiles, rows flattened as (col, chan)
    w_ref: (3, (wb+2)*c, wb*cout)  banded conv weight for one width block (resident)
    b_ref: (1, wb*cout)            bias broadcast over the width block (f32, resident)
    o_ref: (tb, h, w*cout)         lane-dense conv output (w*cout = 128 in the demo)
    """
    n_wb = w // wb   # _pick_width_block always returns a divisor of w

    def kernel(x_ref, w_ref, b_ref, o_ref):
        b = b_ref[...]            # (1, wb*cout), f32
        # Resident weight slabs loaded once per grid step (hoisted out of the loops).
        w0 = w_ref[0]
        w1 = w_ref[1]
        w2 = w_ref[2]
        for t in range(tb):       # static unroll: TB tiles per grid step
            x = x_ref[t]          # (h+2, (w+2)*c)
            for j in range(n_wb):
                lo = j * wb * c
                hi = lo + (wb + 2) * c
                # 3 row-shifted matmuls accumulate the kh taps; the kw/ci taps live
                # in the banded weight, so no im2col / per-element gathers needed.
                acc = jnp.dot(x[0:h, lo:hi], w0,
                              preferred_element_type=jnp.float32)
                acc = acc + jnp.dot(x[1:h + 1, lo:hi], w1,
                                    preferred_element_type=jnp.float32)
                acc = acc + jnp.dot(x[2:h + 2, lo:hi], w2,
                                    preferred_element_type=jnp.float32)
                res = (acc + b).astype(o_ref.dtype)   # bias add stays f32 (v5e-safe)
                if n_wb == 1:
                    o_ref[t] = res
                else:
                    o_ref[t, :, j * wb * cout:(j + 1) * wb * cout] = res

    return kernel


def _fused_conv_pallas(tiles, w_banded, b_row, c, cout, wb, tb):
    """tiles: (T, h+2, (w+2)*c) with T % tb == 0 -> conv output (T, h, w*cout), f32."""
    t, hp2, wpc = tiles.shape
    assert t % tb == 0
    h = hp2 - 2
    w = wpc // c - 2
    kernel = _make_conv_kernel(h, w, c, cout, wb, tb)
    return pl.pallas_call(
        kernel,
        out_shape=jax.ShapeDtypeStruct((t, h, w * cout), jnp.float32),
        grid_spec=pltpu.PrefetchScalarGridSpec(
            num_scalar_prefetch=0,
            grid=(t // tb,),                               # TB chop tiles per step
            in_specs=[
                pl.BlockSpec((tb, hp2, wpc), lambda i: (i, 0, 0)),
                pl.BlockSpec(w_banded.shape, lambda i: (0, 0, 0)),   # resident weight
                pl.BlockSpec(b_row.shape, lambda i: (0, 0)),         # resident bias
            ],
            out_specs=pl.BlockSpec((tb, h, w * cout), lambda i: (i, 0, 0)),
        ),
        compiler_params=pltpu.CompilerParams(
            dimension_semantics=("parallel",),             # megacore-shard tile axis
            vmem_limit_bytes=32 * 1024 * 1024,
        ),
    )(tiles, w_banded, b_row)


# ----------------------------------------------------------------------------
# Chop geometry helpers (host-side, all static Python ints)
# ----------------------------------------------------------------------------
def _uniform_windows(tot, chop, overlap):
    """Same windows as the reference except the last start is snapped to tot-chop so
    every window (hence every chop tile) has an identical shape and all tiles batch
    into a single pallas_call.  Because every kept pixel's 3x3 receptive field lies
    strictly inside its window (overlap margin >= conv halo), the stitched result is
    unchanged."""
    if tot <= chop:
        return [0], tot
    stride = chop - overlap
    starts = list(range(0, tot - overlap, stride))
    starts[-1] = tot - chop
    if len(starts) >= 2 and starts[-1] == starts[-2]:
        starts.pop()
    return starts, chop


def _keep_bounds(starts, tot, overlap):
    """Partition [0, tot) so each output pixel is taken from exactly one tile
    (reference margin rule: interior left margin = overlap // 2)."""
    bounds = [0]
    for s in starts[1:]:
        bounds.append(s + overlap // 2)
    bounds.append(tot)
    return bounds


def _pick_width_block(width, cout, max_lanes=256):
    """Largest divisor of `width` whose output slab (wb*cout lanes) stays modest;
    keeps the banded weight small and the extra MXU work bounded while giving
    lane-dense output stores (128 wide for the demo)."""
    best = 1
    for wb in range(1, width + 1):
        if width % wb == 0 and wb * cout <= max(max_lanes, cout):
            best = wb
    return best


def _pick_tile_block(num_tiles):
    """Tiles processed per grid step: amortize per-step overhead / small DMAs, but
    keep >= 2 grid steps so the parallel axis can shard across TensorCores."""
    if num_tiles <= 1:
        return 1
    tb = 8
    while tb > 1 and -(-num_tiles // tb) < 2:
        tb //= 2
    return min(tb, num_tiles)


# ----------------------------------------------------------------------------
# ChoppedModel port
# ----------------------------------------------------------------------------
class ChoppedModelPallas:
    """JAX/Pallas port of ChoppedModel wrapping the synthetic ESPCN-style SR model."""

    def __init__(self, w_conv, bias, scale, chop_size, chop_overlap,
                 compute_dtype=jnp.float32):
        self.scale = int(scale)
        self.chop_size = int(chop_size)
        self.chop_overlap = int(chop_overlap)
        self.compute_dtype = compute_dtype
        self.cout, self.c = int(w_conv.shape[0]), int(w_conv.shape[1])
        assert self.cout == self.c * self.scale * self.scale
        # Host-side (numpy) copies used to build banded weights without per-element
        # device dispatches.  (kh, kw, cin, cout) layout.
        self._w_khwc_np = np.transpose(np.asarray(w_conv, dtype=np.float32),
                                       (2, 3, 1, 0))
        self._bias_np = np.asarray(bias, dtype=np.float32)
        self._banded = {}   # width-block -> (banded weight, bias row)
        # Whole forward (pad/gather/pallas/pixel-shuffle/stitch) as one XLA program.
        self._forward_jit = jax.jit(
            self._forward_impl,
            static_argnames=("x_starts", "y_starts", "wx", "wy", "wb", "tb"))

    # -- hoisted (once per width-block, not per tile / per call) ----------------
    def _banded_weight(self, wb):
        if wb not in self._banded:
            c, cout = self.c, self.cout
            m = np.zeros((3, (wb + 2) * c, wb * cout), dtype=np.float32)
            for kw in range(3):
                for wpos in range(wb):
                    m[:, (wpos + kw) * c:(wpos + kw + 1) * c,
                      wpos * cout:(wpos + 1) * cout] = self._w_khwc_np[:, kw]
            b_row = np.tile(self._bias_np, wb).reshape(1, wb * cout)
            self._banded[wb] = (jnp.asarray(m, dtype=self.compute_dtype),
                                jnp.asarray(b_row, dtype=jnp.float32))
        return self._banded[wb]

    # -- jitted forward body (all geometry is static) ---------------------------
    def _forward_impl(self, x, w_banded, b_row, *, x_starts, y_starts, wx, wy, wb, tb):
        n = x.shape[0]
        width, height = x.shape[2], x.shape[3]
        s = self.scale

        # Hoisted layout work: NCHW -> NHWC and zero padding, once per forward.
        x_pad = jnp.pad(jnp.transpose(x, (0, 2, 3, 1)),
                        ((0, 0), (1, 1), (1, 1), (0, 0)))

        # Gather every (uniform-size) chop tile and batch them into ONE pallas_call.
        tiles = [x_pad[:, xs:xs + wx + 2, ys:ys + wy + 2, :]
                 for xs in x_starts for ys in y_starts]
        stacked = jnp.stack(tiles, axis=0)                 # (Tw, N, wx+2, wy+2, C)
        tw = stacked.shape[0]
        t_real = tw * n
        stacked = stacked.reshape(t_real, wx + 2, (wy + 2) * self.c)
        stacked = stacked.astype(self.compute_dtype)       # bf16 halves HBM bytes
        t_pad = -(-t_real // tb) * tb
        if t_pad != t_real:                                 # pad to TB multiple
            stacked = jnp.pad(stacked, ((0, t_pad - t_real), (0, 0), (0, 0)))

        conv = _fused_conv_pallas(stacked, w_banded, b_row,
                                  self.c, self.cout, wb, tb)
        conv = conv[:t_real]

        # conv: (Tw*N, wx, wy*Cout).  Pixel-shuffle + NCHW restore once on the stack.
        hr = conv.reshape(len(x_starts), len(y_starts), n, wx, wy, self.c, s, s)
        hr = jnp.transpose(hr, (0, 1, 2, 5, 3, 6, 4, 7))
        hr = hr.reshape(len(x_starts), len(y_starts), n, self.c, wx * s, wy * s)

        # Stitch with static slices + concatenate (no full-result .set copies).
        xb = _keep_bounds(list(x_starts), width, self.chop_overlap)
        yb = _keep_bounds(list(y_starts), height, self.chop_overlap)
        rows = []
        for i, xs in enumerate(x_starts):
            cols = []
            for j, ys in enumerate(y_starts):
                cols.append(hr[i, j][:, :,
                                     (xb[i] - xs) * s:(xb[i + 1] - xs) * s,
                                     (yb[j] - ys) * s:(yb[j + 1] - ys) * s])
            rows.append(cols[0] if len(cols) == 1 else jnp.concatenate(cols, axis=3))
        return rows[0] if len(rows) == 1 else jnp.concatenate(rows, axis=2)

    # -- public API --------------------------------------------------------------
    def __call__(self, x):
        if x.ndim != 4:
            raise ValueError('Super-Resolution models expect a tensor with 4 dimensions')
        n, cin, width, height = x.shape
        assert cin == self.c
        if self.chop_overlap > self.chop_size / 2:
            raise ValueError(
                f'Chop size {self.chop_size} is too small for overlap {self.chop_overlap}')

        x_starts, wx = _uniform_windows(width, self.chop_size, self.chop_overlap)
        y_starts, wy = _uniform_windows(height, self.chop_size, self.chop_overlap)
        if len(x_starts) > 1 or len(y_starts) > 1:
            # Trimmed overlap must cover the 3x3 conv halo (1 px each side).
            assert self.chop_overlap >= 2, \
                'chop_overlap must be >= 2 for the 3x3-conv inner model'

        wb = _pick_width_block(wy, self.cout)
        tb = _pick_tile_block(len(x_starts) * len(y_starts) * n)
        w_banded, b_row = self._banded_weight(wb)
        return self._forward_jit(x, w_banded, b_row,
                                 x_starts=tuple(x_starts), y_starts=tuple(y_starts),
                                 wx=wx, wy=wy, wb=wb, tb=tb)


# ----------------------------------------------------------------------------
# Pure-JAX reference: exact port of the PyTorch chop_and_forward (for validation)
# ----------------------------------------------------------------------------
def get_windows(tot_size, chop_size, chop_overlap):
    stride = chop_size - chop_overlap
    starts = list(range(0, tot_size - chop_overlap, stride))
    starts[-1] = min(starts[-1], tot_size - stride)
    starts[-1] = max(starts[-1], 0)
    return starts


def chop_and_forward_reference(model_fn, x, scale, chop_size, chop_overlap):
    if x.ndim != 4:
        raise ValueError('Super-Resolution models expect a tensor with 4 dimensions')
    width = x.shape[2]
    height = x.shape[3]
    if chop_overlap > chop_size / 2:
        raise ValueError(f'Chop size {chop_size} is too small for overlap {chop_overlap}')
    if width <= chop_size and height <= chop_size:
        return model_fn(x)
    x_starts = get_windows(width, chop_size, chop_overlap)
    y_starts = get_windows(height, chop_size, chop_overlap)
    result = jnp.zeros((x.shape[0], x.shape[1], scale * width, scale * height),
                       dtype=jnp.float32)
    for i, x_s in enumerate(x_starts):
        for j, y_s in enumerate(y_starts):
            x_e = min(x_s + chop_size, width)
            y_e = min(y_s + chop_size, height)
            out = model_fn(x[:, :, x_s:x_e, y_s:y_e])
            l_margin = 0 if i == 0 else chop_overlap // 2
            r_margin = 0 if i == len(x_starts) - 1 else chop_overlap - chop_overlap // 2
            b_margin = 0 if j == 0 else chop_overlap // 2
            t_margin = 0 if j == len(y_starts) - 1 else chop_overlap - chop_overlap // 2
            l_margin *= scale
            r_margin *= scale
            b_margin *= scale
            t_margin *= scale
            x_a = scale * x_s + l_margin
            x_b = scale * x_e - r_margin
            y_a = scale * y_s + b_margin
            y_b = scale * y_e - t_margin
            assert x_b > x_a and y_b > y_a
            r_margin = None if r_margin == 0 else -r_margin
            t_margin = None if t_margin == 0 else -t_margin
            tile = out[:, :, l_margin:r_margin, b_margin:t_margin]
            result = result.at[:, :, x_a:x_b, y_a:y_b].set(tile)
    return result


def _ref_inner_model(x_nchw, w_conv, bias, scale):
    """Pure-JAX ESPCN-style inner model: 3x3 same conv + PyTorch-order pixel shuffle."""
    y = jax.lax.conv_general_dilated(
        x_nchw, w_conv, window_strides=(1, 1), padding=((1, 1), (1, 1)),
        dimension_numbers=('NCHW', 'OIHW', 'NCHW'),
        precision=jax.lax.Precision.HIGHEST)
    y = y + bias[None, :, None, None]
    n, cr2, h, w = y.shape
    c = cr2 // (scale * scale)
    y = y.reshape(n, c, scale, scale, h, w)
    y = jnp.transpose(y, (0, 1, 4, 2, 5, 3))
    return y.reshape(n, c, h * scale, w * scale)


# ----------------------------------------------------------------------------
if __name__ == "__main__":
    # Small, deterministic configuration that exercises the chopping path.
    N, C, H, W = 2, 4, 16, 16
    scale = 2
    chop_size = 8
    chop_overlap = 4

    key = jax.random.PRNGKey(0)
    kx, kw, kb = jax.random.split(key, 3)
    x = jax.random.normal(kx, (N, C, H, W), dtype=jnp.float32)

    Cout = C * scale * scale
    w_conv = 0.1 * jax.random.normal(kw, (Cout, C, 3, 3), dtype=jnp.float32)
    bias = 0.01 * jax.random.normal(kb, (Cout,), dtype=jnp.float32)

    # f32 Pallas path
    model = ChoppedModelPallas(w_conv, bias, scale, chop_size, chop_overlap)
    out = jax.block_until_ready(model(x))
    assert out.shape == (N, C, scale * H, scale * W), out.shape

    # Exact port of the PyTorch chop_and_forward with a pure-JAX inner model.
    ref_model = functools.partial(_ref_inner_model, w_conv=w_conv, bias=bias,
                                  scale=scale)
    ref = jax.block_until_ready(
        chop_and_forward_reference(ref_model, x, scale, chop_size, chop_overlap))
    assert jnp.allclose(out, ref, atol=1e-3, rtol=1e-3), \
        float(jnp.max(jnp.abs(out - ref)))

    # bf16 fast path (v6e/v7x): bf16 inputs/weights, f32 MXU accumulation.
    model_bf16 = ChoppedModelPallas(w_conv, bias, scale, chop_size, chop_overlap,
                                    compute_dtype=jnp.bfloat16)
    out_bf16 = jax.block_until_ready(model_bf16(x))
    assert out_bf16.shape == (N, C, scale * H, scale * W)
    assert jnp.allclose(out_bf16, ref, atol=5e-2, rtol=5e-2), \
        float(jnp.max(jnp.abs(out_bf16 - ref)))

    print("KERNEL_OK")
</pallas_src>

<mosaic_0001>
module attributes {stable_mosaic.version = 11 : i64} {
  func.func @kernel(%arg0: i32, %arg1: memref<8x10x40xf32, #tpu.memory_space<vmem>>, %arg2: memref<3x40x128xf32, #tpu.memory_space<vmem>>, %arg3: memref<1x128xf32, #tpu.memory_space<vmem>>, %arg4: memref<8x8x128xf32, #tpu.memory_space<vmem>>) attributes {dimension_semantics = [#tpu.dimension_semantics<parallel>], iteration_bounds = array<i64: 3>, scalar_prefetch = 0 : i64, scratch_operands = 0 : i64, tpu.core_type = #tpu.core_type<tc>, window_params = [{transform_indices = @transform_0, window_bounds = array<i64: 8, 10, 40>}, {pipeline_mode = #tpu.pipeline_mode<synchronous>, transform_indices = @transform_1, window_bounds = array<i64: 3, 40, 128>}, {pipeline_mode = #tpu.pipeline_mode<synchronous>, transform_indices = @transform_2, window_bounds = array<i64: 1, 128>}, {transform_indices = @transform_3, window_bounds = array<i64: 8, 8, 128>}]} {
    %c0 = arith.constant 0 : index
    %c0_0 = arith.constant 0 : index
    %0 = vector.load %arg3[%c0, %c0_0] : memref<1x128xf32, #tpu.memory_space<vmem>>, vector<1x128xf32>
    %c0_1 = arith.constant 0 : index
    %c0_2 = arith.constant 0 : index
    %c0_3 = arith.constant 0 : index
    %1 = vector.load %arg2[%c0_1, %c0_2, %c0_3] : memref<3x40x128xf32, #tpu.memory_space<vmem>>, vector<1x40x128xf32>
    %2 = vector.shape_cast %1 : vector<1x40x128xf32> to vector<40x128xf32>
    %c1 = arith.constant 1 : index
    %c0_4 = arith.constant 0 : index
    %c0_5 = arith.constant 0 : index
    %3 = vector.load %arg2[%c1, %c0_4, %c0_5] : memref<3x40x128xf32, #tpu.memory_space<vmem>>, vector<1x40x128xf32>
    %4 = vector.shape_cast %3 : vector<1x40x128xf32> to vector<40x128xf32>
    %c2 = arith.constant 2 : index
    %c0_6 = arith.constant 0 : index
    %c0_7 = arith.constant 0 : index
    %5 = vector.load %arg2[%c2, %c0_6, %c0_7] : memref<3x40x128xf32, #tpu.memory_space<vmem>>, vector<1x40x128xf32>
    %6 = vector.shape_cast %5 : vector<1x40x128xf32> to vector<40x128xf32>
    %c0_8 = arith.constant 0 : index
    %c0_9 = arith.constant 0 : index
    %c0_10 = arith.constant 0 : index
    %7 = vector.load %arg1[%c0_8, %c0_9, %c0_10] : memref<8x10x40xf32, #tpu.memory_space<vmem>>, vector<1x10x40xf32>
    %8 = vector.shape_cast %7 : vector<1x10x40xf32> to vector<10x40xf32>
    %9 = vector.extract_strided_slice %8 {offsets = [0, 0], sizes = [8, 40], strides = [1, 1]} : vector<10x40xf32> to vector<8x40xf32>
    %cst = arith.constant dense<0.000000e+00> : vector<8x128xf32>
    %10 = tpu.matmul %9, %2, %cst {dimension_numbers = #tpu.dot_dimension_numbers<[1], [0], [0], [1], [0, 0, 1, 1], [], []>} : vector<8x40xf32>, vector<40x128xf32>, vector<8x128xf32> -> vector<8x128xf32>
    %11 = vector.extract_strided_slice %8 {offsets = [1, 0], sizes = [8, 40], strides = [1, 1]} : vector<10x40xf32> to vector<8x40xf32>
    %cst_11 = arith.constant dense<0.000000e+00> : vector<8x128xf32>
    %12 = tpu.matmul %11, %4, %cst_11 {dimension_numbers = #tpu.dot_dimension_numbers<[1], [0], [0], [1], [0, 0, 1, 1], [], []>} : vector<8x40xf32>, vector<40x128xf32>, vector<8x128xf32> -> vector<8x128xf32>
    %13 = arith.addf %10, %12 : vector<8x128xf32>
    %14 = vector.extract_strided_slice %8 {offsets = [2, 0], sizes = [8, 40], strides = [1, 1]} : vector<10x40xf32> to vector<8x40xf32>
    %cst_12 = arith.constant dense<0.000000e+00> : vector<8x128xf32>
    %15 = tpu.matmul %14, %6, %cst_12 {dimension_numbers = #tpu.dot_dimension_numbers<[1], [0], [0], [1], [0, 0, 1, 1], [], []>} : vector<8x40xf32>, vector<40x128xf32>, vector<8x128xf32> -> vector<8x128xf32>
    %16 = arith.addf %13, %15 : vector<8x128xf32>
    %17 = vector.broadcast %0 : vector<1x128xf32> to vector<8x128xf32>
    %18 = arith.addf %16, %17 : vector<8x128xf32>
    %c0_13 = arith.constant 0 : index
    %c0_14 = arith.constant 0 : index
    %c0_15 = arith.constant 0 : index
    %19 = vector.load %arg4[%c0_13, %c0_14, %c0_15] : memref<8x8x128xf32, #tpu.memory_space<vmem>>, vector<1x8x128xf32>
    %20 = vector.shape_cast %19 : vector<1x8x128xf32> to vector<8x128xf32>
    %21 = vector.shape_cast %18 : vector<8x128xf32> to vector<1x8x128xf32>
    tpu.vector_store %arg4[%c0_13, %c0_14, %c0_15], %21 {strides = array<i32>} : memref<8x8x128xf32, #tpu.memory_space<vmem>>, vector<1x8x128xf32>,
    %c1_16 = arith.constant 1 : index
    %c0_17 = arith.constant 0 : index
    %c0_18 = arith.constant 0 : index
    %22 = vector.load %arg1[%c1_16, %c0_17, %c0_18] : memref<8x10x40xf32, #tpu.memory_space<vmem>>, vector<1x10x40xf32>
    %23 = vector.shape_cast %22 : vector<1x10x40xf32> to vector<10x40xf32>
    %24 = vector.extract_strided_slice %23 {offsets = [0, 0], sizes = [8, 40], strides = [1, 1]} : vector<10x40xf32> to vector<8x40xf32>
    %cst_19 = arith.constant dense<0.000000e+00> : vector<8x128xf32>
    %25 = tpu.matmul %24, %2, %cst_19 {dimension_numbers = #tpu.dot_dimension_numbers<[1], [0], [0], [1], [0, 0, 1, 1], [], []>} : vector<8x40xf32>, vector<40x128xf32>, vector<8x128xf32> -> vector<8x128xf32>
    %26 = vector.extract_strided_slice %23 {offsets = [1, 0], sizes = [8, 40], strides = [1, 1]} : vector<10x40xf32> to vector<8x40xf32>
    %cst_20 = arith.constant dense<0.000000e+00> : vector<8x128xf32>
    %27 = tpu.matmul %26, %4, %cst_20 {dimension_numbers = #tpu.dot_dimension_numbers<[1], [0], [0], [1], [0, 0, 1, 1], [], []>} : vector<8x40xf32>, vector<40x128xf32>, vector<8x128xf32> -> vector<8x128xf32>
    %28 = arith.addf %25, %27 : vector<8x128xf32>
    %29 = vector.extract_strided_slice %23 {offsets = [2, 0], sizes = [8, 40], strides = [1, 1]} : vector<10x40xf32> to vector<8x40xf32>
    %cst_21 = arith.constant dense<0.000000e+00> : vector<8x128xf32>
    %30 = tpu.matmul %29, %6, %cst_21 {dimension_numbers = #tpu.dot_dimension_numbers<[1], [0], [0], [1], [0, 0, 1, 1], [], []>} : vector<8x40xf32>, vector<40x128xf32>, vector<8x128xf32> -> vector<8x128xf32>
    %31 = arith.addf %28, %30 : vector<8x128xf32>
    %32 = vector.broadcast %0 : vector<1x128xf32> to vector<8x128xf32>
    %33 = arith.addf %31, %32 : vector<8x128xf32>
    %c1_22 = arith.constant 1 : index
    %c0_23 = arith.constant 0 : index
    %c0_24 = arith.constant 0 : index
    %34 = vector.load %arg4[%c1_22, %c0_23, %c0_24] : memref<8x8x128xf32, #tpu.memory_space<vmem>>, vector<1x8x128xf32>
    %35 = vector.shape_cast %34 : vector<1x8x128xf32> to vector<8x128xf32>
    %36 = vector.shape_cast %33 : vector<8x128xf32> to vector<1x8x128xf32>
    tpu.vector_store %arg4[%c1_22, %c0_23, %c0_24], %36 {strides = array<i32>} : memref<8x8x128xf32, #tpu.memory_space<vmem>>, vector<1x8x128xf32>,
    %c2_25 = arith.constant 2 : index
    %c0_26 = arith.constant 0 : index
    %c0_27 = arith.constant 0 : index
    %37 = vector.load %arg1[%c2_25, %c0_26, %c0_27] : memref<8x10x40xf32, #tpu.memory_space<vmem>>, vector<1x10x40xf32>
    %38 = vector.shape_cast %37 : vector<1x10x40xf32> to vector<10x40xf32>
    %39 = vector.extract_strided_slice %38 {offsets = [0, 0], sizes = [8, 40], strides = [1, 1]} : vector<10x40xf32> to vector<8x40xf32>
    %cst_28 = arith.constant dense<0.000000e+00> : vector<8x128xf32>
    %40 = tpu.matmul %39, %2, %cst_28 {dimension_numbers = #tpu.dot_dimension_numbers<[1], [0], [0], [1], [0, 0, 1, 1], [], []>} : vector<8x40xf32>, vector<40x128xf32>, vector<8x128xf32> -> vector<8x128xf32>
    %41 = vector.extract_strided_slice %38 {offsets = [1, 0], sizes = [8, 40], strides = [1, 1]} : vector<10x40xf32> to vector<8x40xf32>
    %cst_29 = arith.constant dense<0.000000e+00> : vector<8x128xf32>
    %42 = tpu.matmul %41, %4, %cst_29 {dimension_numbers = #tpu.dot_dimension_numbers<[1], [0], [0], [1], [0, 0, 1, 1], [], []>} : vector<8x40xf32>, vector<40x128xf32>, vector<8x128xf32> -> vector<8x128xf32>
    %43 = arith.addf %40, %42 : vector<8x128xf32>
    %44 = vector.extract_strided_slice %38 {offsets = [2, 0], sizes = [8, 40], strides = [1, 1]} : vector<10x40xf32> to vector<8x40xf32>
    %cst_30 = arith.constant dense<0.000000e+00> : vector<8x128xf32>
    %45 = tpu.matmul %44, %6, %cst_30 {dimension_numbers = #tpu.dot_dimension_numbers<[1], [0], [0], [1], [0, 0, 1, 1], [], []>} : vector<8x40xf32>, vector<40x128xf32>, vector<8x128xf32> -> vector<8x128xf32>
    %46 = arith.addf %43, %45 : vector<8x128xf32>
    %47 = vector.broadcast %0 : vector<1x128xf32> to vector<8x128xf32>
    %48 = arith.addf %46, %47 : vector<8x128xf32>
    %c2_31 = arith.constant 2 : index
    %c0_32 = arith.constant 0 : index
    %c0_33 = arith.constant 0 : index
    %49 = vector.load %arg4[%c2_31, %c0_32, %c0_33] : memref<8x8x128xf32, #tpu.memory_space<vmem>>, vector<1x8x128xf32>
    %50 = vector.shape_cast %49 : vector<1x8x128xf32> to vector<8x128xf32>
    %51 = vector.shape_cast %48 : vector<8x128xf32> to vector<1x8x128xf32>
    tpu.vector_store %arg4[%c2_31, %c0_32, %c0_33], %51 {strides = array<i32>} : memref<8x8x128xf32, #tpu.memory_space<vmem>>, vector<1x8x128xf32>,
    %c3 = arith.constant 3 : index
    %c0_34 = arith.constant 0 : index
    %c0_35 = arith.constant 0 : index
    %52 = vector.load %arg1[%c3, %c0_34, %c0_35] : memref<8x10x40xf32, #tpu.memory_space<vmem>>, vector<1x10x40xf32>
    %53 = vector.shape_cast %52 : vector<1x10x40xf32> to vector<10x40xf32>
    %54 = vector.extract_strided_slice %53 {offsets = [0, 0], sizes = [8, 40], strides = [1, 1]} : vector<10x40xf32> to vector<8x40xf32>
    %cst_36 = arith.constant dense<0.000000e+00> : vector<8x128xf32>
    %55 = tpu.matmul %54, %2, %cst_36 {dimension_numbers = #tpu.dot_dimension_numbers<[1], [0], [0], [1], [0, 0, 1, 1], [], []>} : vector<8x40xf32>, vector<40x128xf32>, vector<8x128xf32> -> vector<8x128xf32>
    %56 = vector.extract_strided_slice %53 {offsets = [1, 0], sizes = [8, 40], strides = [1, 1]} : vector<10x40xf32> to vector<8x40xf32>
    %cst_37 = arith.constant dense<0.000000e+00> : vector<8x128xf32>
    %57 = tpu.matmul %56, %4, %cst_37 {dimension_numbers = #tpu.dot_dimension_numbers<[1], [0], [0], [1], [0, 0, 1, 1], [], []>} : vector<8x40xf32>, vector<40x128xf32>, vector<8x128xf32> -> vector<8x128xf32>
    %58 = arith.addf %55, %57 : vector<8x128xf32>
    %59 = vector.extract_strided_slice %53 {offsets = [2, 0], sizes = [8, 40], strides = [1, 1]} : vector<10x40xf32> to vector<8x40xf32>
    %cst_38 = arith.constant dense<0.000000e+00> : vector<8x128xf32>
    %60 = tpu.matmul %59, %6, %cst_38 {dimension_numbers = #tpu.dot_dimension_numbers<[1], [0], [0], [1], [0, 0, 1, 1], [], []>} : vector<8x40xf32>, vector<40x128xf32>, vector<8x128xf32> -> vector<8x128xf32>
    %61 = arith.addf %58, %60 : vector<8x128xf32>
    %62 = vector.broadcast %0 : vector<1x128xf32> to vector<8x128xf32>
    %63 = arith.addf %61, %62 : vector<8x128xf32>
    %c3_39 = arith.constant 3 : index
    %c0_40 = arith.constant 0 : index
    %c0_41 = arith.constant 0 : index
    %64 = vector.load %arg4[%c3_39, %c0_40, %c0_41] : memref<8x8x128xf32, #tpu.memory_space<vmem>>, vector<1x8x128xf32>
    %65 = vector.shape_cast %64 : vector<1x8x128xf32> to vector<8x128xf32>
    %66 = vector.shape_cast %63 : vector<8x128xf32> to vector<1x8x128xf32>
    tpu.vector_store %arg4[%c3_39, %c0_40, %c0_41], %66 {strides = array<i32>} : memref<8x8x128xf32, #tpu.memory_space<vmem>>, vector<1x8x128xf32>,
    %c4 = arith.constant 4 : index
    %c0_42 = arith.constant 0 : index
    %c0_43 = arith.constant 0 : index
    %67 = vector.load %arg1[%c4, %c0_42, %c0_43] : memref<8x10x40xf32, #tpu.memory_space<vmem>>, vector<1x10x40xf32>
    %68 = vector.shape_cast %67 : vector<1x10x40xf32> to vector<10x40xf32>
    %69 = vector.extract_strided_slice %68 {offsets = [0, 0], sizes = [8, 40], strides = [1, 1]} : vector<10x40xf32> to vector<8x40xf32>
    %cst_44 = arith.constant dense<0.000000e+00> : vector<8x128xf32>
    %70 = tpu.matmul %69, %2, %cst_44 {dimension_numbers = #tpu.dot_dimension_numbers<[1], [0], [0], [1], [0, 0, 1, 1], [], []>} : vector<8x40xf32>, vector<40x128xf32>, vector<8x128xf32> -> vector<8x128xf32>
    %71 = vector.extract_strided_slice %68 {offsets = [1, 0], sizes = [8, 40], strides = [1, 1]} : vector<10x40xf32> to vector<8x40xf32>
    %cst_45 = arith.constant dense<0.000000e+00> : vector<8x128xf32>
    %72 = tpu.matmul %71, %4, %cst_45 {dimension_numbers = #tpu.dot_dimension_numbers<[1], [0], [0], [1], [0, 0, 1, 1], [], []>} : vector<8x40xf32>, vector<40x128xf32>, vector<8x128xf32> -> vector<8x128xf32>
    %73 = arith.addf %70, %72 : vector<8x128xf32>
    %74 = vector.extract_strided_slice %68 {offsets = [2, 0], sizes = [8, 40], strides = [1, 1]} : vector<10x40xf32> to vector<8x40xf32>
    %cst_46 = arith.constant dense<0.000000e+00> : vector<8x128xf32>
    %75 = tpu.matmul %74, %6, %cst_46 {dimension_numbers = #tpu.dot_dimension_numbers<[1], [0], [0], [1], [0, 0, 1, 1], [], []>} : vector<8x40xf32>, vector<40x128xf32>, vector<8x128xf32> -> vector<8x128xf32>
    %76 = arith.addf %73, %75 : vector<8x128xf32>
    %77 = vector.broadcast %0 : vector<1x128xf32> to vector<8x128xf32>
    %78 = arith.addf %76, %77 : vector<8x128xf32>
    %c4_47 = arith.constant 4 : index
    %c0_48 = arith.constant 0 : index
    %c0_49 = arith.constant 0 : index
    %79 = vector.load %arg4[%c4_47, %c0_48, %c0_49] : memref<8x8x128xf32, #tpu.memory_space<vmem>>, vector<1x8x128xf32>
    %80 = vector.shape_cast %79 : vector<1x8x128xf32> to vector<8x128xf32>
    %81 = vector.shape_cast %78 : vector<8x128xf32> to vector<1x8x128xf32>
    tpu.vector_store %arg4[%c4_47, %c0_48, %c0_49], %81 {strides = array<i32>} : memref<8x8x128xf32, #tpu.memory_space<vmem>>, vector<1x8x128xf32>,
    %c5 = arith.constant 5 : index
    %c0_50 = arith.constant 0 : index
    %c0_51 = arith.constant 0 : index
    %82 = vector.load %arg1[%c5, %c0_50, %c0_51] : memref<8x10x40xf32, #tpu.memory_space<vmem>>, vector<1x10x40xf32>
    %83 = vector.shape_cast %82 : vector<1x10x40xf32> to vector<10x40xf32>
    %84 = vector.extract_strided_slice %83 {offsets = [0, 0], sizes = [8, 40], strides = [1, 1]} : vector<10x40xf32> to vector<8x40xf32>
    %cst_52 = arith.constant dense<0.000000e+00> : vector<8x128xf32>
    %85 = tpu.matmul %84, %2, %cst_52 {dimension_numbers = #tpu.dot_dimension_numbers<[1], [0], [0], [1], [0, 0, 1, 1], [], []>} : vector<8x40xf32>, vector<40x128xf32>, vector<8x128xf32> -> vector<8x128xf32>
    %86 = vector.extract_strided_slice %83 {offsets = [1, 0], sizes = [8, 40], strides = [1, 1]} : vector<10x40xf32> to vector<8x40xf32>
    %cst_53 = arith.constant dense<0.000000e+00> : vector<8x128xf32>
    %87 = tpu.matmul %86, %4, %cst_53 {dimension_numbers = #tpu.dot_dimension_numbers<[1], [0], [0], [1], [0, 0, 1, 1], [], []>} : vector<8x40xf32>, vector<40x128xf32>, vector<8x128xf32> -> vector<8x128xf32>
    %88 = arith.addf %85, %87 : vector<8x128xf32>
    %89 = vector.extract_strided_slice %83 {offsets = [2, 0], sizes = [8, 40], strides = [1, 1]} : vector<10x40xf32> to vector<8x40xf32>
    %cst_54 = arith.constant dense<0.000000e+00> : vector<8x128xf32>
    %90 = tpu.matmul %89, %6, %cst_54 {dimension_numbers = #tpu.dot_dimension_numbers<[1], [0], [0], [1], [0, 0, 1, 1], [], []>} : vector<8x40xf32>, vector<40x128xf32>, vector<8x128xf32> -> vector<8x128xf32>
    %91 = arith.addf %88, %90 : vector<8x128xf32>
    %92 = vector.broadcast %0 : vector<1x128xf32> to vector<8x128xf32>
    %93 = arith.addf %91, %92 : vector<8x128xf32>
    %c5_55 = arith.constant 5 : index
    %c0_56 = arith.constant 0 : index
    %c0_57 = arith.constant 0 : index
    %94 = vector.load %arg4[%c5_55, %c0_56, %c0_57] : memref<8x8x128xf32, #tpu.memory_space<vmem>>, vector<1x8x128xf32>
    %95 = vector.shape_cast %94 : vector<1x8x128xf32> to vector<8x128xf32>
    %96 = vector.shape_cast %93 : vector<8x128xf32> to vector<1x8x128xf32>
    tpu.vector_store %arg4[%c5_55, %c0_56, %c0_57], %96 {strides = array<i32>} : memref<8x8x128xf32, #tpu.memory_space<vmem>>, vector<1x8x128xf32>,
    %c6 = arith.constant 6 : index
    %c0_58 = arith.constant 0 : index
    %c0_59 = arith.constant 0 : index
    %97 = vector.load %arg1[%c6, %c0_58, %c0_59] : memref<8x10x40xf32, #tpu.memory_space<vmem>>, vector<1x10x40xf32>
    %98 = vector.shape_cast %97 : vector<1x10x40xf32> to vector<10x40xf32>
    %99 = vector.extract_strided_slice %98 {offsets = [0, 0], sizes = [8, 40], strides = [1, 1]} : vector<10x40xf32> to vector<8x40xf32>
    %cst_60 = arith.constant dense<0.000000e+00> : vector<8x128xf32>
    %100 = tpu.matmul %99, %2, %cst_60 {dimension_numbers = #tpu.dot_dimension_numbers<[1], [0], [0], [1], [0, 0, 1, 1], [], []>} : vector<8x40xf32>, vector<40x128xf32>, vector<8x128xf32> -> vector<8x128xf32>
    %101 = vector.extract_strided_slice %98 {offsets = [1, 0], sizes = [8, 40], strides = [1, 1]} : vector<10x40xf32> to vector<8x40xf32>
    %cst_61 = arith.constant dense<0.000000e+00> : vector<8x128xf32>
    %102 = tpu.matmul %101, %4, %cst_61 {dimension_numbers = #tpu.dot_dimension_numbers<[1], [0], [0], [1], [0, 0, 1, 1], [], []>} : vector<8x40xf32>, vector<40x128xf32>, vector<8x128xf32> -> vector<8x128xf32>
    %103 = arith.addf %100, %102 : vector<8x128xf32>
    %104 = vector.extract_strided_slice %98 {offsets = [2, 0], sizes = [8, 40], strides = [1, 1]} : vector<10x40xf32> to vector<8x40xf32>
    %cst_62 = arith.constant dense<0.000000e+00> : vector<8x128xf32>
    %105 = tpu.matmul %104, %6, %cst_62 {dimension_numbers = #tpu.dot_dimension_numbers<[1], [0], [0], [1], [0, 0, 1, 1], [], []>} : vector<8x40xf32>, vector<40x128xf32>, vector<8x128xf32> -> vector<8x128xf32>
    %106 = arith.addf %103, %105 : vector<8x128xf32>
    %107 = vector.broadcast %0 : vector<1x128xf32> to vector<8x128xf32>
    %108 = arith.addf %106, %107 : vector<8x128xf32>
    %c6_63 = arith.constant 6 : index
    %c0_64 = arith.constant 0 : index
    %c0_65 = arith.constant 0 : index
    %109 = vector.load %arg4[%c6_63, %c0_64, %c0_65] : memref<8x8x128xf32, #tpu.memory_space<vmem>>, vector<1x8x128xf32>
    %110 = vector.shape_cast %109 : vector<1x8x128xf32> to vector<8x128xf32>
    %111 = vector.shape_cast %108 : vector<8x128xf32> to vector<1x8x128xf32>
    tpu.vector_store %arg4[%c6_63, %c0_64, %c0_65], %111 {strides = array<i32>} : memref<8x8x128xf32, #tpu.memory_space<vmem>>, vector<1x8x128xf32>,
    %c7 = arith.constant 7 : index
    %c0_66 = arith.constant 0 : index
    %c0_67 = arith.constant 0 : index
    %112 = vector.load %arg1[%c7, %c0_66, %c0_67] : memref<8x10x40xf32, #tpu.memory_space<vmem>>, vector<1x10x40xf32>
    %113 = vector.shape_cast %112 : vector<1x10x40xf32> to vector<10x40xf32>
    %114 = vector.extract_strided_slice %113 {offsets = [0, 0], sizes = [8, 40], strides = [1, 1]} : vector<10x40xf32> to vector<8x40xf32>
    %cst_68 = arith.constant dense<0.000000e+00> : vector<8x128xf32>
    %115 = tpu.matmul %114, %2, %cst_68 {dimension_numbers = #tpu.dot_dimension_numbers<[1], [0], [0], [1], [0, 0, 1, 1], [], []>} : vector<8x40xf32>, vector<40x128xf32>, vector<8x128xf32> -> vector<8x128xf32>
    %116 = vector.extract_strided_slice %113 {offsets = [1, 0], sizes = [8, 40], strides = [1, 1]} : vector<10x40xf32> to vector<8x40xf32>
    %cst_69 = arith.constant dense<0.000000e+00> : vector<8x128xf32>
    %117 = tpu.matmul %116, %4, %cst_69 {dimension_numbers = #tpu.dot_dimension_numbers<[1], [0], [0], [1], [0, 0, 1, 1], [], []>} : vector<8x40xf32>, vector<40x128xf32>, vector<8x128xf32> -> vector<8x128xf32>
    %118 = arith.addf %115, %117 : vector<8x128xf32>
    %119 = vector.extract_strided_slice %113 {offsets = [2, 0], sizes = [8, 40], strides = [1, 1]} : vector<10x40xf32> to vector<8x40xf32>
    %cst_70 = arith.constant dense<0.000000e+00> : vector<8x128xf32>
    %120 = tpu.matmul %119, %6, %cst_70 {dimension_numbers = #tpu.dot_dimension_numbers<[1], [0], [0], [1], [0, 0, 1, 1], [], []>} : vector<8x40xf32>, vector<40x128xf32>, vector<8x128xf32> -> vector<8x128xf32>
    %121 = arith.addf %118, %120 : vector<8x128xf32>
    %122 = vector.broadcast %0 : vector<1x128xf32> to vector<8x128xf32>
    %123 = arith.addf %121, %122 : vector<8x128xf32>
    %c7_71 = arith.constant 7 : index
    %c0_72 = arith.constant 0 : index
    %c0_73 = arith.constant 0 : index
    %124 = vector.load %arg4[%c7_71, %c0_72, %c0_73] : memref<8x8x128xf32, #tpu.memory_space<vmem>>, vector<1x8x128xf32>
    %125 = vector.shape_cast %124 : vector<1x8x128xf32> to vector<8x128xf32>
    %126 = vector.shape_cast %123 : vector<8x128xf32> to vector<1x8x128xf32>
    tpu.vector_store %arg4[%c7_71, %c0_72, %c0_73], %126 {strides = array<i32>} : memref<8x8x128xf32, #tpu.memory_space<vmem>>, vector<1x8x128xf32>,
    return
  }
  func.func @transform_0(%arg0: i32) -> (i32, i32, i32) {
    %c0_i32 = arith.constant 0 : i32
    %c0_i32_0 = arith.constant 0 : i32
    %c0_i32_1 = arith.constant 0 : i32
    return %arg0, %c0_i32, %c0_i32_0 : i32, i32, i32
  }
  func.func @transform_1(%arg0: i32) -> (i32, i32, i32) {
    %c0_i32 = arith.constant 0 : i32
    %c0_i32_0 = arith.constant 0 : i32
    %c0_i32_1 = arith.constant 0 : i32
    %c0_i32_2 = arith.constant 0 : i32
    return %c0_i32, %c0_i32_0, %c0_i32_1 : i32, i32, i32
  }
  func.func @transform_2(%arg0: i32) -> (i32, i32) {
    %c0_i32 = arith.constant 0 : i32
    %c0_i32_0 = arith.constant 0 : i32
    %c0_i32_1 = arith.constant 0 : i32
    return %c0_i32, %c0_i32_0 : i32, i32
  }
  func.func @transform_3(%arg0: i32) -> (i32, i32, i32) {
    %c0_i32 = arith.constant 0 : i32
    %c0_i32_0 = arith.constant 0 : i32
    %c0_i32_1 = arith.constant 0 : i32
    return %arg0, %c0_i32, %c0_i32_0 : i32, i32, i32
  }
}

</mosaic_0001>

<llo_original>
// kernel: _forward_impl.1
$region0: #{_forward_impl.1}
  #allocation0 [shape = 'u32[]', space=smem, size = 0x4, offset = 0x4, fixed_abs, tag = 'smem constant byte address 0x4 - core index']
  #allocation1 [shape = 'u32[144,128]{1,0:T(1,128)}', space=vmem, size = 0x12000, scoped, tag = 'internal scratch']
  %s0 = inlined_call_operand.vmem [shape: f32[24,10,40], index: 0, kind: input, shape index: {}]
  %s1 = inlined_call_operand.vmem [shape: f32[3,40,128], index: 1, kind: input, shape index: {}]
  %s2 = inlined_call_operand.vmem [shape: f32[1,128], index: 2, kind: input, shape index: {}]
  %s3 = inlined_call_operand.vmem [shape: f32[24,8,128], index: 3, kind: output, shape index: {}]
  %s4 = sld [smem:[#allocation0]]
  $region45: #{_forward_impl.1} parent=0
    _
  %s6 = ssub.s32 1, %s4
  %s7 = scalar_select 0, %s6, %s4
  loop: start=0, step=1, limit=5
  $region2: #{_forward_impl.1} parent=0 // loop_pre_header
    _
  $region3: #{_forward_impl.1} parent=0 // loop_header
    %s9 = sphi 0, %s13
    %p10 = scmp.ge.s32.totalorder %s9, 5
    %s19 = sphi 0, %s21
    %s22 = sphi 0, %s19
    %s23 = sphi 0, %s22
    %s39 = sphi 0, %s23
    %s43 = sphi 0, %s43
    %s45 = sphi 0, %s43
    %s46 = sphi 0, %s45
    %s60 = sphi 0, %s46
    %s64 = sphi 0, %s64
    %s66 = sphi 0, %s64
    %s67 = sphi 0, %s66
    %s81 = sphi 0, %s67
    %s87 = sphi 0, %s89
    %s90 = sphi 0, %s87
    %s91 = sphi 0, %s90
    %s107 = sphi 0, %s91
  $region4: #{_forward_impl.1} parent=0 // loop_header_branch
    %12 = sbr.rel (%p10) target = $region8
  $region5: #{_forward_impl.1} parent=0 // loop_body
    %s14 = ssub.s32 %s9, 1
    %s15 = ssub.s32 %s9, 2
    %s16 = sadd.s32 %s9, 1
    %s17 = ssub.s32 %s9, %s16
    %p18 = scmp.eq.s32.totalorder %s17, 0
    %s20 = sadd.s32 %s19, 1
    %s21 = scalar_select %p18, %s19, %s20
    %p24 = pneg %p18
    %p25 = scmp.eq.s32.totalorder %s9, 2
    %p26 = por %p24, %p25
    %p27 = scmp.ne.s32.totalorder %s19, %s22
    %p28 = scmp.eq.s32.totalorder %s9, 0
    %p29 = por %p27, %p28
    %p30 = scmp.ne.s32.totalorder %s19, %s22
    %p31 = scmp.eq.s32.totalorder %s14, 2
    %p32 = por %p30, %p31
    %p33 = scmp.ne.s32.totalorder %s22, %s23
    %p34 = scmp.eq.s32.totalorder %s14, 0
    %p35 = por %p33, %p34
    %p36 = scmp.ne.s32.totalorder %s22, %s23
    %p37 = scmp.eq.s32.totalorder %s15, 2
    %p38 = por %p36, %p37
    %p40 = scmp.ne.s32.totalorder %s23, %s39
    %p41 = scmp.eq.s32.totalorder %s15, 0
    %p42 = por %p40, %p41
    %s44 = sadd.s32 %s43, 1
    %p47 = scmp.eq.s32.totalorder %s9, 2
    %p48 = scmp.ne.s32.totalorder %s43, %s45
    %p49 = scmp.eq.s32.totalorder %s9, 0
    %p50 = por %p48, %p49
    %p51 = scmp.ne.s32.totalorder %s43, %s45
    %p52 = scmp.eq.s32.totalorder %s14, 2
    %p53 = por %p51, %p52
    %p54 = scmp.ne.s32.totalorder %s45, %s46
    %p55 = scmp.eq.s32.totalorder %s14, 0
    %p56 = por %p54, %p55
    %p57 = scmp.ne.s32.totalorder %s45, %s46
    %p58 = scmp.eq.s32.totalorder %s15, 2
    %p59 = por %p57, %p58
    %p61 = scmp.ne.s32.totalorder %s46, %s60
    %p62 = scmp.eq.s32.totalorder %s15, 0
    %p63 = por %p61, %p62
    %s65 = sadd.s32 %s64, 1
    %p68 = scmp.eq.s32.totalorder %s9, 2
    %p69 = scmp.ne.s32.totalorder %s64, %s66
    %p70 = scmp.eq.s32.totalorder %s9, 0
    %p71 = por %p69, %p70
    %p72 = scmp.ne.s32.totalorder %s64, %s66
    %p73 = scmp.eq.s32.totalorder %s14, 2
    %p74 = por %p72, %p73
    %p75 = scmp.ne.s32.totalorder %s66, %s67
    %p76 = scmp.eq.s32.totalorder %s14, 0
    %p77 = por %p75, %p76
    %p78 = scmp.ne.s32.totalorder %s66, %s67
    %p79 = scmp.eq.s32.totalorder %s15, 2
    %p80 = por %p78, %p79
    %p82 = scmp.ne.s32.totalorder %s67, %s81
    %p83 = scmp.eq.s32.totalorder %s15, 0
    %p84 = por %p82, %p83
    %s85 = ssub.s32 %s9, %s16
    %p86 = scmp.eq.s32.totalorder %s85, 0
    %s88 = sadd.s32 %s87, 1
    %s89 = scalar_select %p86, %s87, %s88
    %p92 = pneg %p86
    %p93 = scmp.eq.s32.totalorder %s9, 2
    %p94 = por %p92, %p93
    %p95 = scmp.ne.s32.totalorder %s87, %s90
    %p96 = scmp.eq.s32.totalorder %s9, 0
    %p97 = por %p95, %p96
    %p98 = scmp.ne.s32.totalorder %s87, %s90
    %p99 = scmp.eq.s32.totalorder %s14, 2
    %p100 = por %p98, %p99
    %p101 = scmp.ne.s32.totalorder %s90, %s91
    %p102 = scmp.eq.s32.totalorder %s14, 0
    %p103 = por %p101, %p102
    %p104 = scmp.ne.s32.totalorder %s90, %s91
    %p105 = scmp.eq.s32.totalorder %s15, 2
    %p106 = por %p104, %p105
    %p108 = scmp.ne.s32.totalorder %s91, %s107
    %p109 = scmp.eq.s32.totalorder %s15, 0
    %p110 = por %p108, %p109
    %p111 = scmp.le.s32.totalorder 1, %s9
    %p112 = scmp.lt.s32.totalorder %s9, 4
    %p113 = pnand %p111, %p112
    %p114 = pneg %p113
    // Predicated region
    $region9: #{_forward_impl.1} parent=5 // pred_check
      _
    $region10: #{_forward_impl.1} parent=5 // pred_check_branch
      %116 = sbr.rel (%p113) target = $region12
    $region11: #{_forward_impl.1} parent=5 // pred_region
      %s117 = ssub.s32 %s9, 1
      // Predicated region
      $region13: #{_forward_impl.1} parent=11 // pred_check
        %p118 = pneg %p56
      $region14: #{_forward_impl.1} parent=11 // pred_check_branch
        %120 = sbr.rel (%p118) target = $region16
      $region15: #{_forward_impl.1} parent=11 // pred_region
        _
      $region16: #{_forward_impl.1} parent=11 // pred_fallthru
        _
      // Predicated region
      $region17: #{_forward_impl.1} parent=11 // pred_check
        %p121 = pneg %p77
      $region18: #{_forward_impl.1} parent=11 // pred_check_branch
        %123 = sbr.rel (%p121) target = $region20
      $region19: #{_forward_impl.1} parent=11 // pred_region
        _
      $region20: #{_forward_impl.1} parent=11 // pred_fallthru
        _
    $region12: #{_forward_impl.1} parent=5 // pred_fallthru
      _
    %p124 = scmp.lt.s32.totalorder %s9, 3
    // Predicated region
    $region21: #{_forward_impl.1} parent=5 // pred_check
      %p125 = pneg %p124
    $region22: #{_forward_impl.1} parent=5 // pred_check_branch
      %127 = sbr.rel (%p125) target = $region24
    $region23: #{_forward_impl.1} parent=5 // pred_region
      // Predicated region
      $region25: #{_forward_impl.1} parent=23 // pred_check
        %p128 = pneg %p29
      $region26: #{_forward_impl.1} parent=23 // pred_check_branch
        %130 = sbr.rel (%p128) target = $region28
      $region27: #{_forward_impl.1} parent=23 // pred_region
        %s131 = smul.u32 8, %s9
        %p132 = scmp.lt.s32.totalorder %s131, 23
        %s133 = scalar_select %p132, %s131, 23
        %s134 = smul.addr %s133, 2
        %s135 = smul.addr %s134, 8
        %s136 = scalar_lea.vmem %s0, %s135
        %s137 = smul.u32 8, %s9
      $region28: #{_forward_impl.1} parent=23 // pred_fallthru
        _
    $region24: #{_forward_impl.1} parent=5 // pred_fallthru
      _
    %p138 = scmp.le.s32.totalorder 1, %s9
    %p139 = scmp.lt.s32.totalorder %s9, 4
    %p140 = pnand %p138, %p139
    %p141 = pneg %p140
    // Predicated region
    $region29: #{_forward_impl.1} parent=5 // pred_check
      _
    $region30: #{_forward_impl.1} parent=5 // pred_check_branch
      %143 = sbr.rel (%p140) target = $region32
    $region31: #{_forward_impl.1} parent=5 // pred_region
      %s144 = ssub.s32 %s9, 1
      %s145 = smul.u32 8, %s14
      %p146 = scmp.lt.s32.totalorder %s145, 23
      %s147 = scalar_select %p146, %s145, 23
      %s148 = smul.addr %s147, 2
      %s149 = smul.addr %s148, 8
      %s150 = scalar_lea.vmem %s0, %s149
      %p151 = pneg %p35
      %p152 = pneg %p32
      %p153 = pneg %p56
      %p154 = pneg %p53
      %p155 = pneg %p77
      %p156 = pneg %p74
      %p157 = pneg %p103
      %p158 = pneg %p100
      %s159 = smul.u32 8, %s14
      %p160 = scmp.lt.s32.totalorder %s159, 23
      %s161 = scalar_select %p160, %s159, 23
      %s162 = smul.addr %s161, 8
      %s163 = scalar_lea.vmem %s3, %s162
      %s164 = smul.u32 8, %s14
      %p165 = scmp.lt.s32.totalorder %s164, 23
      %s166 = scalar_select %p165, %s164, 23
      %s167 = smul.addr %s166, 2
      %s168 = smul.addr %s167, 8
      %s169 = scalar_lea.vmem %s0, %s168
      %s170 = smul.u32 8, %s14
      %s171 = smul.u32 8, %s14
      %p172 = scmp.lt.s32.totalorder %s171, 23
      %s173 = scalar_select %p172, %s171, 23
      %s174 = smul.addr %s173, 8
      %s175 = scalar_lea.vmem %s3, %s174
      %s176 = smul.u32 8, %s14
      %v177 = vld [vmem:[%s2] sm:$0x1]
      %v178 = vld [vmem:[%s1] sm:$0xff]
      %v179 = vld [vmem:[%s1 + $0x8] sm:$0xff]
      %v180 = vld [vmem:[%s1 + $0x10] sm:$0xff]
      %v181 = vld [vmem:[%s1 + $0x18] sm:$0xff]
      %v182 = vld [vmem:[%s1 + $0x20] sm:$0xff]
      %s183 = scalar_lea.vmem %s1, 40
      %v184 = vld [vmem:[%s183] sm:$0xff]
      %v185 = vld [vmem:[%s183 + $0x8] sm:$0xff]
      %v186 = vld [vmem:[%s183 + $0x10] sm:$0xff]
      %v187 = vld [vmem:[%s183 + $0x18] sm:$0xff]
      %v188 = vld [vmem:[%s183 + $0x20] sm:$0xff]
      %s189 = scalar_lea.vmem %s1, 80
      %v190 = vld [vmem:[%s189] sm:$0xff]
      %v191 = vld [vmem:[%s189 + $0x8] sm:$0xff]
      %v192 = vld [vmem:[%s189 + $0x10] sm:$0xff]
      %v193 = vld [vmem:[%s189 + $0x18] sm:$0xff]
      %v194 = vld [vmem:[%s189 + $0x20] sm:$0xff]
      %v195 = vld [vmem:[%s169] sm:$0xff]
      %v196 = vld [vmem:[%s169 + $0x8] sm:$0x3]
      %vm199 = vcmask 1046528
      %v200 = vrot.slane %v195, 1
      %v201 = vrot.slane %v196, 1
      %v202 = vsel %vm199, %v200, %v201
      %vm203 = vcmask 326656
      %v204 = vsel %vm203, %v202, 0
      %206 = vmatprep.subr.mxu0 0.0
      %207 = vmatpush1.msra.mxu0 0.0
      %208 = vmatprep.subr.mxu0 0.0
      %209 = vmatpush1.msra.mxu0 0.0
      %210 = vmatprep.subr.mxu0 0.0
      %211 = vmatpush1.msra.mxu0 0.0
      %212 = vmatprep.subr.mxu0 0.0
      %213 = vmatpush1.msra.mxu0 0.0
      %214 = vmatprep.subr.mxu0 0.0
      %215 = vmatpush1.msra.mxu0 0.0
      %216 = vmatprep.subr.mxu0 0.0
      %217 = vmatpush1.msra.mxu0 0.0
      %218 = vmatprep.subr.mxu0 0.0
      %219 = vmatpush1.msra.mxu0 0.0
      %220 = vmatprep.subr.mxu0 0.0
      %221 = vmatpush1.msra.mxu0 0.0
      %222 = vmatprep.subr.mxu0 0.0
      %223 = vmatpush1.msra.mxu0 0.0
      %224 = vmatprep.subr.mxu0 0.0
      %225 = vmatpush1.msra.mxu0 0.0
      %226 = vmatprep.subr.mxu0 0.0
      %227 = vmatpush1.msra.mxu0 0.0
      %228 = vmatprep.subr.mxu0 0.0
      %229 = vmatpush1.msra.mxu0 %v188
      %230 = vmatprep.subr.mxu0 0.0
      %231 = vmatpush1.msra.mxu0 %v187
      %232 = vmatprep.subr.mxu0 0.0
      %233 = vmatpush1.msra.mxu0 %v186
      %234 = vmatprep.subr.mxu0 0.0
      %235 = vmatpush1.msra.mxu0 %v185
      %236 = vmatprep.subr.mxu0 0.0
      %237 = vmatpush1.msra.mxu0 %v184
      %238 = vmatprep.subr.mxu0 0.0
      %239 = vmatpush2.msra.mxu0 0.0
      %240 = vmatprep.subr.mxu0 0.0
      %241 = vmatpush2.msra.mxu0 0.0
      %242 = vmatprep.subr.mxu0 0.0
      %243 = vmatpush2.msra.mxu0 0.0
      %244 = vmatprep.subr.mxu0 0.0
      %245 = vmatpush2.msra.mxu0 0.0
      %246 = vmatprep.subr.mxu0 0.0
      %247 = vmatpush2.msra.mxu0 0.0
      %248 = vmatprep.subr.mxu0 0.0
      %249 = vmatpush2.msra.mxu0 0.0
      %250 = vmatprep.subr.mxu0 0.0
      %251 = vmatpush2.msra.mxu0 0.0
      %252 = vmatprep.subr.mxu0 0.0
      %253 = vmatpush2.msra.mxu0 0.0
      %254 = vmatprep.subr.mxu0 0.0
      %255 = vmatpush2.msra.mxu0 0.0
      %256 = vmatprep.subr.mxu0 0.0
      %257 = vmatpush2.msra.mxu0 0.0
      %258 = vmatprep.subr.mxu0 0.0
      %259 = vmatpush2.msra.mxu0 0.0
      %260 = vmatprep.subr.mxu0 0.0
      %261 = vmatpush2.msra.mxu0 0.0
      %262 = vmatprep.subr.mxu0 0.0
      %263 = vmatpush2.msra.mxu0 0.0
      %264 = vmatprep.subr.mxu0 0.0
      %265 = vmatpush2.msra.mxu0 0.0
      %266 = vmatprep.subr.mxu0 0.0
      %267 = vmatpush2.msra.mxu0 0.0
      %268 = vmatprep.subr.mxu0 0.0
      %269 = vmatpush2.msra.mxu0 0.0
      %270 = vmatprep.mubr.f32.mxu0 0.0
      %271 = vmatmul.mubr.f32.gmra.mxu0 %v204
      %v272 = vpop.f32.mrf.mxu0
      %v273 = vadd.f32 0.0, %v272
      %v274 = vpop.f32.mrf.mxu0
      %275 = vdwg.mxu0
      %v276 = vsel %vm203, %v195, 0
      %278 = vmatprep.subr.mxu0 0.0
      %279 = vmatpush1.msra.mxu0 0.0
      %280 = vmatprep.subr.mxu0 0.0
      %281 = vmatpush1.msra.mxu0 0.0
      %282 = vmatprep.subr.mxu0 0.0
      %283 = vmatpush1.msra.mxu0 0.0
      %284 = vmatprep.subr.mxu0 0.0
      %285 = vmatpush1.msra.mxu0 0.0
      %286 = vmatprep.subr.mxu0 0.0
      %287 = vmatpush1.msra.mxu0 0.0
      %288 = vmatprep.subr.mxu0 0.0
      %289 = vmatpush1.msra.mxu0 0.0
      %290 = vmatprep.subr.mxu0 0.0
      %291 = vmatpush1.msra.mxu0 0.0
      %292 = vmatprep.subr.mxu0 0.0
      %293 = vmatpush1.msra.mxu0 0.0
      %294 = vmatprep.subr.mxu0 0.0
      %295 = vmatpush1.msra.mxu0 0.0
      %296 = vmatprep.subr.mxu0 0.0
      %297 = vmatpush1.msra.mxu0 0.0
      %298 = vmatprep.subr.mxu0 0.0
      %299 = vmatpush1.msra.mxu0 0.0
      %300 = vmatprep.subr.mxu0 0.0
      %301 = vmatpush1.msra.mxu0 %v182
      %302 = vmatprep.subr.mxu0 0.0
      %303 = vmatpush1.msra.mxu0 %v181
      %304 = vmatprep.subr.mxu0 0.0
      %305 = vmatpush1.msra.mxu0 %v180
      %306 = vmatprep.subr.mxu0 0.0
      %307 = vmatpush1.msra.mxu0 %v179
      %308 = vmatprep.subr.mxu0 0.0
      %309 = vmatpush1.msra.mxu0 %v178
      %310 = vmatprep.subr.mxu0 0.0
      %311 = vmatpush2.msra.mxu0 0.0
      %312 = vmatprep.subr.mxu0 0.0
      %313 = vmatpush2.msra.mxu0 0.0
      %314 = vmatprep.subr.mxu0 0.0
      %315 = vmatpush2.msra.mxu0 0.0
      %316 = vmatprep.subr.mxu0 0.0
      %317 = vmatpush2.msra.mxu0 0.0
      %318 = vmatprep.subr.mxu0 0.0
      %319 = vmatpush2.msra.mxu0 0.0
      %320 = vmatprep.subr.mxu0 0.0
      %321 = vmatpush2.msra.mxu0 0.0
      %322 = vmatprep.subr.mxu0 0.0
      %323 = vmatpush2.msra.mxu0 0.0
      %324 = vmatprep.subr.mxu0 0.0
      %325 = vmatpush2.msra.mxu0 0.0
      %326 = vmatprep.subr.mxu0 0.0
      %327 = vmatpush2.msra.mxu0 0.0
      %328 = vmatprep.subr.mxu0 0.0
      %329 = vmatpush2.msra.mxu0 0.0
      %330 = vmatprep.subr.mxu0 0.0
      %331 = vmatpush2.msra.mxu0 0.0
      %332 = vmatprep.subr.mxu0 0.0
      %333 = vmatpush2.msra.mxu0 0.0
      %334 = vmatprep.subr.mxu0 0.0
      %335 = vmatpush2.msra.mxu0 0.0
      %336 = vmatprep.subr.mxu0 0.0
      %337 = vmatpush2.msra.mxu0 0.0
      %338 = vmatprep.subr.mxu0 0.0
      %339 = vmatpush2.msra.mxu0 0.0
      %340 = vmatprep.subr.mxu0 0.0
      %341 = vmatpush2.msra.mxu0 0.0
      %342 = vmatprep.mubr.f32.mxu0 0.0
      %343 = vmatmul.mubr.f32.gmra.mxu0 %v276
      %v344 = vpop.f32.mrf.mxu0
      %v345 = vadd.f32 %v273, %v344
      %v346 = vpop.f32.mrf.mxu0
      %347 = vdwg.mxu0
      %vm348 = vcmask 1045504
      %v349 = vrot.slane %v195, 2
      %v350 = vrot.slane %v196, 2
      %v351 = vsel %vm348, %v349, %v350
      %v352 = vsel %vm203, %v351, 0
      %354 = vmatprep.subr.mxu0 0.0
      %355 = vmatpush1.msra.mxu0 0.0
      %356 = vmatprep.subr.mxu0 0.0
      %357 = vmatpush1.msra.mxu0 0.0
      %358 = vmatprep.subr.mxu0 0.0
      %359 = vmatpush1.msra.mxu0 0.0
      %360 = vmatprep.subr.mxu0 0.0
      %361 = vmatpush1.msra.mxu0 0.0
      %362 = vmatprep.subr.mxu0 0.0
      %363 = vmatpush1.msra.mxu0 0.0
      %364 = vmatprep.subr.mxu0 0.0
      %365 = vmatpush1.msra.mxu0 0.0
      %366 = vmatprep.subr.mxu0 0.0
      %367 = vmatpush1.msra.mxu0 0.0
      %368 = vmatprep.subr.mxu0 0.0
      %369 = vmatpush1.msra.mxu0 0.0
      %370 = vmatprep.subr.mxu0 0.0
      %371 = vmatpush1.msra.mxu0 0.0
      %372 = vmatprep.subr.mxu0 0.0
      %373 = vmatpush1.msra.mxu0 0.0
      %374 = vmatprep.subr.mxu0 0.0
      %375 = vmatpush1.msra.mxu0 0.0
      %376 = vmatprep.subr.mxu0 0.0
      %377 = vmatpush1.msra.mxu0 %v194
      %378 = vmatprep.subr.mxu0 0.0
      %379 = vmatpush1.msra.mxu0 %v193
      %380 = vmatprep.subr.mxu0 0.0
      %381 = vmatpush1.msra.mxu0 %v192
      %382 = vmatprep.subr.mxu0 0.0
      %383 = vmatpush1.msra.mxu0 %v191
      %384 = vmatprep.subr.mxu0 0.0
      %385 = vmatpush1.msra.mxu0 %v190
      %386 = vmatprep.subr.mxu0 0.0
      %387 = vmatpush2.msra.mxu0 0.0
      %388 = vmatprep.subr.mxu0 0.0
      %389 = vmatpush2.msra.mxu0 0.0
      %390 = vmatprep.subr.mxu0 0.0
      %391 = vmatpush2.msra.mxu0 0.0
      %392 = vmatprep.subr.mxu0 0.0
      %393 = vmatpush2.msra.mxu0 0.0
      %394 = vmatprep.subr.mxu0 0.0
      %395 = vmatpush2.msra.mxu0 0.0
      %396 = vmatprep.subr.mxu0 0.0
      %397 = vmatpush2.msra.mxu0 0.0
      %398 = vmatprep.subr.mxu0 0.0
      %399 = vmatpush2.msra.mxu0 0.0
      %400 = vmatprep.subr.mxu0 0.0
      %401 = vmatpush2.msra.mxu0 0.0
      %402 = vmatprep.subr.mxu0 0.0
      %403 = vmatpush2.msra.mxu0 0.0
      %404 = vmatprep.subr.mxu0 0.0
      %405 = vmatpush2.msra.mxu0 0.0
      %406 = vmatprep.subr.mxu0 0.0
      %407 = vmatpush2.msra.mxu0 0.0
      %408 = vmatprep.subr.mxu0 0.0
      %409 = vmatpush2.msra.mxu0 0.0
      %410 = vmatprep.subr.mxu0 0.0
      %411 = vmatpush2.msra.mxu0 0.0
      %412 = vmatprep.subr.mxu0 0.0
      %413 = vmatpush2.msra.mxu0 0.0
      %414 = vmatprep.subr.mxu0 0.0
      %415 = vmatpush2.msra.mxu0 0.0
      %416 = vmatprep.subr.mxu0 0.0
      %417 = vmatpush2.msra.mxu0 0.0
      %418 = vmatprep.mubr.f32.mxu0 0.0
      %419 = vmatmul.mubr.f32.gmra.mxu0 %v352
      %v420 = vpop.f32.mrf.mxu0
      %v421 = vadd.f32 0.0, %v420
      %v422 = vpop.f32.mrf.mxu0
      %423 = vdwg.mxu0
      %v424 = vadd.f32 %v345, %v421
      %v426 = vlaneseq
      %v427 = vshrl.u32 %v426, 7
      %v428 = vsub.s32 0, %v427
      %v429 = vrot.slane %v177, %v428
      %v431 = vadd.f32 %v424, %v429
      %432 = vst [vmem:[%s175] sm:$0xff] %v431
      %s433 = scalar_lea.vmem %s169, 16
      %v434 = vld [vmem:[%s433] sm:$0xff]
      %v435 = vld [vmem:[%s433 + $0x8] sm:$0x3]
      %v438 = vrot.slane %v434, 1
      %v439 = vrot.slane %v435, 1
      %v440 = vsel %vm199, %v438, %v439
      %v441 = vsel %vm203, %v440, 0
      %443 = vmatprep.subr.mxu0 0.0
      %444 = vmatpush1.msra.mxu0 0.0
      %445 = vmatprep.subr.mxu0 0.0
      %446 = vmatpush1.msra.mxu0 0.0
      %447 = vmatprep.subr.mxu0 0.0
      %448 = vmatpush1.msra.mxu0 0.0
      %449 = vmatprep.subr.mxu0 0.0
      %450 = vmatpush1.msra.mxu0 0.0
      %451 = vmatprep.subr.mxu0 0.0
      %452 = vmatpush1.msra.mxu0 0.0
      %453 = vmatprep.subr.mxu0 0.0
      %454 = vmatpush1.msra.mxu0 0.0
      %455 = vmatprep.subr.mxu0 0.0
      %456 = vmatpush1.msra.mxu0 0.0
      %457 = vmatprep.subr.mxu0 0.0
      %458 = vmatpush1.msra.mxu0 0.0
      %459 = vmatprep.subr.mxu0 0.0
      %460 = vmatpush1.msra.mxu0 0.0
      %461 = vmatprep.subr.mxu0 0.0
      %462 = vmatpush1.msra.mxu0 0.0
      %463 = vmatprep.subr.mxu0 0.0
      %464 = vmatpush1.msra.mxu0 0.0
      %465 = vmatprep.subr.mxu0 0.0
      %466 = vmatpush1.msra.mxu0 %v188
      %467 = vmatprep.subr.mxu0 0.0
      %468 = vmatpush1.msra.mxu0 %v187
      %469 = vmatprep.subr.mxu0 0.0
      %470 = vmatpush1.msra.mxu0 %v186
      %471 = vmatprep.subr.mxu0 0.0
      %472 = vmatpush1.msra.mxu0 %v185
      %473 = vmatprep.subr.mxu0 0.0
      %474 = vmatpush1.msra.mxu0 %v184
      %475 = vmatprep.subr.mxu0 0.0
      %476 = vmatpush2.msra.mxu0 0.0
      %477 = vmatprep.subr.mxu0 0.0
      %478 = vmatpush2.msra.mxu0 0.0
      %479 = vmatprep.subr.mxu0 0.0
      %480 = vmatpush2.msra.mxu0 0.0
      %481 = vmatprep.subr.mxu0 0.0
      %482 = vmatpush2.msra.mxu0 0.0
      %483 = vmatprep.subr.mxu0 0.0
      %484 = vmatpush2.msra.mxu0 0.0
      %485 = vmatprep.subr.mxu0 0.0
      %486 = vmatpush2.msra.mxu0 0.0
      %487 = vmatprep.subr.mxu0 0.0
      %488 = vmatpush2.msra.mxu0 0.0
      %489 = vmatprep.subr.mxu0 0.0
      %490 = vmatpush2.msra.mxu0 0.0
      %491 = vmatprep.subr.mxu0 0.0
      %492 = vmatpush2.msra.mxu0 0.0
      %493 = vmatprep.subr.mxu0 0.0
      %494 = vmatpush2.msra.mxu0 0.0
      %495 = vmatprep.subr.mxu0 0.0
      %496 = vmatpush2.msra.mxu0 0.0
      %497 = vmatprep.subr.mxu0 0.0
      %498 = vmatpush2.msra.mxu0 0.0
      %499 = vmatprep.subr.mxu0 0.0
      %500 = vmatpush2.msra.mxu0 0.0
      %501 = vmatprep.subr.mxu0 0.0
      %502 = vmatpush2.msra.mxu0 0.0
      %503 = vmatprep.subr.mxu0 0.0
      %504 = vmatpush2.msra.mxu0 0.0
      %505 = vmatprep.subr.mxu0 0.0
      %506 = vmatpush2.msra.mxu0 0.0
      %507 = vmatprep.mubr.f32.mxu0 0.0
      %508 = vmatmul.mubr.f32.gmra.mxu0 %v441
      %v509 = vpop.f32.mrf.mxu0
      %v510 = vadd.f32 0.0, %v509
      %v511 = vpop.f32.mrf.mxu0
      %512 = vdwg.mxu0
      %v513 = vsel %vm203, %v434, 0
      %515 = vmatprep.subr.mxu0 0.0
      %516 = vmatpush1.msra.mxu0 0.0
      %517 = vmatprep.subr.mxu0 0.0
      %518 = vmatpush1.msra.mxu0 0.0
      %519 = vmatprep.subr.mxu0 0.0
      %520 = vmatpush1.msra.mxu0 0.0
      %521 = vmatprep.subr.mxu0 0.0
      %522 = vmatpush1.msra.mxu0 0.0
      %523 = vmatprep.subr.mxu0 0.0
      %524 = vmatpush1.msra.mxu0 0.0
      %525 = vmatprep.subr.mxu0 0.0
      %526 = vmatpush1.msra.mxu0 0.0
      %527 = vmatprep.subr.mxu0 0.0
      %528 = vmatpush1.msra.mxu0 0.0
      %529 = vmatprep.subr.mxu0 0.0
      %530 = vmatpush1.msra.mxu0 0.0
      %531 = vmatprep.subr.mxu0 0.0
      %532 = vmatpush1.msra.mxu0 0.0
      %533 = vmatprep.subr.mxu0 0.0
      %534 = vmatpush1.msra.mxu0 0.0
      %535 = vmatprep.subr.mxu0 0.0
      %536 = vmatpush1.msra.mxu0 0.0
      %537 = vmatprep.subr.mxu0 0.0
      %538 = vmatpush1.msra.mxu0 %v182
      %539 = vmatprep.subr.mxu0 0.0
      %540 = vmatpush1.msra.mxu0 %v181
      %541 = vmatprep.subr.mxu0 0.0
      %542 = vmatpush1.msra.mxu0 %v180
      %543 = vmatprep.subr.mxu0 0.0
      %544 = vmatpush1.msra.mxu0 %v179
      %545 = vmatprep.subr.mxu0 0.0
      %546 = vmatpush1.msra.mxu0 %v178
      %547 = vmatprep.subr.mxu0 0.0
      %548 = vmatpush2.msra.mxu0 0.0
      %549 = vmatprep.subr.mxu0 0.0
      %550 = vmatpush2.msra.mxu0 0.0
      %551 = vmatprep.subr.mxu0 0.0
      %552 = vmatpush2.msra.mxu0 0.0
      %553 = vmatprep.subr.mxu0 0.0
      %554 = vmatpush2.msra.mxu0 0.0
      %555 = vmatprep.subr.mxu0 0.0
      %556 = vmatpush2.msra.mxu0 0.0
      %557 = vmatprep.subr.mxu0 0.0
      %558 = vmatpush2.msra.mxu0 0.0
      %559 = vmatprep.subr.mxu0 0.0
      %560 = vmatpush2.msra.mxu0 0.0
      %561 = vmatprep.subr.mxu0 0.0
      %562 = vmatpush2.msra.mxu0 0.0
      %563 = vmatprep.subr.mxu0 0.0
      %564 = vmatpush2.msra.mxu0 0.0
      %565 = vmatprep.subr.mxu0 0.0
      %566 = vmatpush2.msra.mxu0 0.0
      %567 = vmatprep.subr.mxu0 0.0
      %568 = vmatpush2.msra.mxu0 0.0
      %569 = vmatprep.subr.mxu0 0.0
      %570 = vmatpush2.msra.mxu0 0.0
      %571 = vmatprep.subr.mxu0 0.0
      %572 = vmatpush2.msra.mxu0 0.0
      %573 = vmatprep.subr.mxu0 0.0
      %574 = vmatpush2.msra.mxu0 0.0
      %575 = vmatprep.subr.mxu0 0.0
      %576 = vmatpush2.msra.mxu0 0.0
      %577 = vmatprep.subr.mxu0 0.0
      %578 = vmatpush2.msra.mxu0 0.0
      %579 = vmatprep.mubr.f32.mxu0 0.0
      %580 = vmatmul.mubr.f32.gmra.mxu0 %v513
      %v581 = vpop.f32.mrf.mxu0
      %v582 = vadd.f32 %v510, %v581
      %v583 = vpop.f32.mrf.mxu0
      %584 = vdwg.mxu0
      %v585 = vrot.slane %v434, 2
      %v586 = vrot.slane %v435, 2
      %v587 = vsel %vm348, %v585, %v586
      %v588 = vsel %vm203, %v587, 0
      %590 = vmatprep.subr.mxu0 0.0
      %591 = vmatpush1.msra.mxu0 0.0
      %592 = vmatprep.subr.mxu0 0.0
      %593 = vmatpush1.msra.mxu0 0.0
      %594 = vmatprep.subr.mxu0 0.0
      %595 = vmatpush1.msra.mxu0 0.0
      %596 = vmatprep.subr.mxu0 0.0
      %597 = vmatpush1.msra.mxu0 0.0
      %598 = vmatprep.subr.mxu0 0.0
      %599 = vmatpush1.msra.mxu0 0.0
      %600 = vmatprep.subr.mxu0 0.0
      %601 = vmatpush1.msra.mxu0 0.0
      %602 = vmatprep.subr.mxu0 0.0
      %603 = vmatpush1.msra.mxu0 0.0
      %604 = vmatprep.subr.mxu0 0.0
      %605 = vmatpush1.msra.mxu0 0.0
      %606 = vmatprep.subr.mxu0 0.0
      %607 = vmatpush1.msra.mxu0 0.0
      %608 = vmatprep.subr.mxu0 0.0
      %609 = vmatpush1.msra.mxu0 0.0
      %610 = vmatprep.subr.mxu0 0.0
      %611 = vmatpush1.msra.mxu0 0.0
      %612 = vmatprep.subr.mxu0 0.0
      %613 = vmatpush1.msra.mxu0 %v194
      %614 = vmatprep.subr.mxu0 0.0
      %615 = vmatpush1.msra.mxu0 %v193
      %616 = vmatprep.subr.mxu0 0.0
      %617 = vmatpush1.msra.mxu0 %v192
      %618 = vmatprep.subr.mxu0 0.0
      %619 = vmatpush1.msra.mxu0 %v191
      %620 = vmatprep.subr.mxu0 0.0
      %621 = vmatpush1.msra.mxu0 %v190
      %622 = vmatprep.subr.mxu0 0.0
      %623 = vmatpush2.msra.mxu0 0.0
      %624 = vmatprep.subr.mxu0 0.0
      %625 = vmatpush2.msra.mxu0 0.0
      %626 = vmatprep.subr.mxu0 0.0
      %627 = vmatpush2.msra.mxu0 0.0
      %628 = vmatprep.subr.mxu0 0.0
      %629 = vmatpush2.msra.mxu0 0.0
      %630 = vmatprep.subr.mxu0 0.0
      %631 = vmatpush2.msra.mxu0 0.0
      %632 = vmatprep.subr.mxu0 0.0
      %633 = vmatpush2.msra.mxu0 0.0
      %634 = vmatprep.subr.mxu0 0.0
      %635 = vmatpush2.msra.mxu0 0.0
      %636 = vmatprep.subr.mxu0 0.0
      %637 = vmatpush2.msra.mxu0 0.0
      %638 = vmatprep.subr.mxu0 0.0
      %639 = vmatpush2.msra.mxu0 0.0
      %640 = vmatprep.subr.mxu0 0.0
      %641 = vmatpush2.msra.mxu0 0.0
      %642 = vmatprep.subr.mxu0 0.0
      %643 = vmatpush2.msra.mxu0 0.0
      %644 = vmatprep.subr.mxu0 0.0
      %645 = vmatpush2.msra.mxu0 0.0
      %646 = vmatprep.subr.mxu0 0.0
      %647 = vmatpush2.msra.mxu0 0.0
      %648 = vmatprep.subr.mxu0 0.0
      %649 = vmatpush2.msra.mxu0 0.0
      %650 = vmatprep.subr.mxu0 0.0
      %651 = vmatpush2.msra.mxu0 0.0
      %652 = vmatprep.subr.mxu0 0.0
      %653 = vmatpush2.msra.mxu0 0.0
      %654 = vmatprep.mubr.f32.mxu0 0.0
      %655 = vmatmul.mubr.f32.gmra.mxu0 %v588
      %v656 = vpop.f32.mrf.mxu0
      %v657 = vadd.f32 0.0, %v656
      %v658 = vpop.f32.mrf.mxu0
      %659 = vdwg.mxu0
      %v660 = vadd.f32 %v582, %v657
      %v661 = vadd.f32 %v660, %v429
      %s662 = scalar_lea.vmem %s175, 8
      %663 = vst [vmem:[%s662] sm:$0xff] %v661
      %s664 = scalar_lea.vmem %s169, 32
      %v665 = vld [vmem:[%s664] sm:$0xff]
      %v666 = vld [vmem:[%s664 + $0x8] sm:$0x3]
      %v669 = vrot.slane %v665, 1
      %v670 = vrot.slane %v666, 1
      %v671 = vsel %vm199, %v669, %v670
      %v672 = vsel %vm203, %v671, 0
      %674 = vmatprep.subr.mxu0 0.0
      %675 = vmatpush1.msra.mxu0 0.0
      %676 = vmatprep.subr.mxu0 0.0
      %677 = vmatpush1.msra.mxu0 0.0
      %678 = vmatprep.subr.mxu0 0.0
      %679 = vmatpush1.msra.mxu0 0.0
      %680 = vmatprep.subr.mxu0 0.0
      %681 = vmatpush1.msra.mxu0 0.0
      %682 = vmatprep.subr.mxu0 0.0
      %683 = vmatpush1.msra.mxu0 0.0
      %684 = vmatprep.subr.mxu0 0.0
      %685 = vmatpush1.msra.mxu0 0.0
      %686 = vmatprep.subr.mxu0 0.0
      %687 = vmatpush1.msra.mxu0 0.0
      %688 = vmatprep.subr.mxu0 0.0
      %689 = vmatpush1.msra.mxu0 0.0
      %690 = vmatprep.subr.mxu0 0.0
      %691 = vmatpush1.msra.mxu0 0.0
      %692 = vmatprep.subr.mxu0 0.0
      %693 = vmatpush1.msra.mxu0 0.0
      %694 = vmatprep.subr.mxu0 0.0
      %695 = vmatpush1.msra.mxu0 0.0
      %696 = vmatprep.subr.mxu0 0.0
      %697 = vmatpush1.msra.mxu0 %v188
      %698 = vmatprep.subr.mxu0 0.0
      %699 = vmatpush1.msra.mxu0 %v187
      %700 = vmatprep.subr.mxu0 0.0
      %701 = vmatpush1.msra.mxu0 %v186
      %702 = vmatprep.subr.mxu0 0.0
      %703 = vmatpush1.msra.mxu0 %v185
      %704 = vmatprep.subr.mxu0 0.0
      %705 = vmatpush1.msra.mxu0 %v184
      %706 = vmatprep.subr.mxu0 0.0
      %707 = vmatpush2.msra.mxu0 0.0
      %708 = vmatprep.subr.mxu0 0.0
      %709 = vmatpush2.msra.mxu0 0.0
      %710 = vmatprep.subr.mxu0 0.0
      %711 = vmatpush2.msra.mxu0 0.0
      %712 = vmatprep.subr.mxu0 0.0
      %713 = vmatpush2.msra.mxu0 0.0
      %714 = vmatprep.subr.mxu0 0.0
      %715 = vmatpush2.msra.mxu0 0.0
      %716 = vmatprep.subr.mxu0 0.0
      %717 = vmatpush2.msra.mxu0 0.0
      %718 = vmatprep.subr.mxu0 0.0
      %719 = vmatpush2.msra.mxu0 0.0
      %720 = vmatprep.subr.mxu0 0.0
      %721 = vmatpush2.msra.mxu0 0.0
      %722 = vmatprep.subr.mxu0 0.0
      %723 = vmatpush2.msra.mxu0 0.0
      %724 = vmatprep.subr.mxu0 0.0
      %725 = vmatpush2.msra.mxu0 0.0
      %726 = vmatprep.subr.mxu0 0.0
      %727 = vmatpush2.msra.mxu0 0.0
      %728 = vmatprep.subr.mxu0 0.0
      %729 = vmatpush2.msra.mxu0 0.0
      %730 = vmatprep.subr.mxu0 0.0
      %731 = vmatpush2.msra.mxu0 0.0
      %732 = vmatprep.subr.mxu0 0.0
      %733 = vmatpush2.msra.mxu0 0.0
      %734 = vmatprep.subr.mxu0 0.0
      %735 = vmatpush2.msra.mxu0 0.0
      %736 = vmatprep.subr.mxu0 0.0
      %737 = vmatpush2.msra.mxu0 0.0
      %738 = vmatprep.mubr.f32.mxu0 0.0
      %739 = vmatmul.mubr.f32.gmra.mxu0 %v672
      %v740 = vpop.f32.mrf.mxu0
      %v741 = vadd.f32 0.0, %v740
      %v742 = vpop.f32.mrf.mxu0
      %743 = vdwg.mxu0
      %v744 = vsel %vm203, %v665, 0
      %746 = vmatprep.subr.mxu0 0.0
      %747 = vmatpush1.msra.mxu0 0.0
      %748 = vmatprep.subr.mxu0 0.0
      %749 = vmatpush1.msra.mxu0 0.0
      %750 = vmatprep.subr.mxu0 0.0
      %751 = vmatpush1.msra.mxu0 0.0
      %752 = vmatprep.subr.mxu0 0.0
      %753 = vmatpush1.msra.mxu0 0.0
      %754 = vmatprep.subr.mxu0 0.0
      %755 = vmatpush1.msra.mxu0 0.0
      %756 = vmatprep.subr.mxu0 0.0
      %757 = vmatpush1.msra.mxu0 0.0
      %758 = vmatprep.subr.mxu0 0.0
      %759 = vmatpush1.msra.mxu0 0.0
      %760 = vmatprep.subr.mxu0 0.0
      %761 = vmatpush1.msra.mxu0 0.0
      %762 = vmatprep.subr.mxu0 0.0
      %763 = vmatpush1.msra.mxu0 0.0
      %764 = vmatprep.subr.mxu0 0.0
      %765 = vmatpush1.msra.mxu0 0.0
      %766 = vmatprep.subr.mxu0 0.0
      %767 = vmatpush1.msra.mxu0 0.0
      %768 = vmatprep.subr.mxu0 0.0
      %769 = vmatpush1.msra.mxu0 %v182
      %770 = vmatprep.subr.mxu0 0.0
      %771 = vmatpush1.msra.mxu0 %v181
      %772 = vmatprep.subr.mxu0 0.0
      %773 = vmatpush1.msra.mxu0 %v180
      %774 = vmatprep.subr.mxu0 0.0
      %775 = vmatpush1.msra.mxu0 %v179
      %776 = vmatprep.subr.mxu0 0.0
      %777 = vmatpush1.msra.mxu0 %v178
      %778 = vmatprep.subr.mxu0 0.0
      %779 = vmatpush2.msra.mxu0 0.0
      %780 = vmatprep.subr.mxu0 0.0
      %781 = vmatpush2.msra.mxu0 0.0
      %782 = vmatprep.subr.mxu0 0.0
      %783 = vmatpush2.msra.mxu0 0.0
      %784 = vmatprep.subr.mxu0 0.0
      %785 = vmatpush2.msra.mxu0 0.0
      %786 = vmatprep.subr.mxu0 0.0
      %787 = vmatpush2.msra.mxu0 0.0
      %788 = vmatprep.subr.mxu0 0.0
      %789 = vmatpush2.msra.mxu0 0.0
      %790 = vmatprep.subr.mxu0 0.0
      %791 = vmatpush2.msra.mxu0 0.0
      %792 = vmatprep.subr.mxu0 0.0
      %793 = vmatpush2.msra.mxu0 0.0
      %794 = vmatprep.subr.mxu0 0.0
      %795 = vmatpush2.msra.mxu0 0.0
      %796 = vmatprep.subr.mxu0 0.0
      %797 = vmatpush2.msra.mxu0 0.0
      %798 = vmatprep.subr.mxu0 0.0
      %799 = vmatpush2.msra.mxu0 0.0
      %800 = vmatprep.subr.mxu0 0.0
      %801 = vmatpush2.msra.mxu0 0.0
      %802 = vmatprep.subr.mxu0 0.0
      %803 = vmatpush2.msra.mxu0 0.0
      %804 = vmatprep.subr.mxu0 0.0
      %805 = vmatpush2.msra.mxu0 0.0
      %806 = vmatprep.subr.mxu0 0.0
      %807 = vmatpush2.msra.mxu0 0.0
      %808 = vmatprep.subr.mxu0 0.0
      %809 = vmatpush2.msra.mxu0 0.0
      %810 = vmatprep.mubr.f32.mxu0 0.0
      %811 = vmatmul.mubr.f32.gmra.mxu0 %v744
      %v812 = vpop.f32.mrf.mxu0
      %v813 = vadd.f32 %v741, %v812
      %v814 = vpop.f32.mrf.mxu0
      %815 = vdwg.mxu0
      %v816 = vrot.slane %v665, 2
      %v817 = vrot.slane %v666, 2
      %v818 = vsel %vm348, %v816, %v817
      %v819 = vsel %vm203, %v818, 0
      %821 = vmatprep.subr.mxu0 0.0
      %822 = vmatpush1.msra.mxu0 0.0
      %823 = vmatprep.subr.mxu0 0.0
      %824 = vmatpush1.msra.mxu0 0.0
      %825 = vmatprep.subr.mxu0 0.0
      %826 = vmatpush1.msra.mxu0 0.0
      %827 = vmatprep.subr.mxu0 0.0
      %828 = vmatpush1.msra.mxu0 0.0
      %829 = vmatprep.subr.mxu0 0.0
      %830 = vmatpush1.msra.mxu0 0.0
      %831 = vmatprep.subr.mxu0 0.0
      %832 = vmatpush1.msra.mxu0 0.0
      %833 = vmatprep.subr.mxu0 0.0
      %834 = vmatpush1.msra.mxu0 0.0
      %835 = vmatprep.subr.mxu0 0.0
      %836 = vmatpush1.msra.mxu0 0.0
      %837 = vmatprep.subr.mxu0 0.0
      %838 = vmatpush1.msra.mxu0 0.0
      %839 = vmatprep.subr.mxu0 0.0
      %840 = vmatpush1.msra.mxu0 0.0
      %841 = vmatprep.subr.mxu0 0.0
      %842 = vmatpush1.msra.mxu0 0.0
      %843 = vmatprep.subr.mxu0 0.0
      %844 = vmatpush1.msra.mxu0 %v194
      %845 = vmatprep.subr.mxu0 0.0
      %846 = vmatpush1.msra.mxu0 %v193
      %847 = vmatprep.subr.mxu0 0.0
      %848 = vmatpush1.msra.mxu0 %v192
      %849 = vmatprep.subr.mxu0 0.0
      %850 = vmatpush1.msra.mxu0 %v191
      %851 = vmatprep.subr.mxu0 0.0
      %852 = vmatpush1.msra.mxu0 %v190
      %853 = vmatprep.subr.mxu0 0.0
      %854 = vmatpush2.msra.mxu0 0.0
      %855 = vmatprep.subr.mxu0 0.0
      %856 = vmatpush2.msra.mxu0 0.0
      %857 = vmatprep.subr.mxu0 0.0
      %858 = vmatpush2.msra.mxu0 0.0
      %859 = vmatprep.subr.mxu0 0.0
      %860 = vmatpush2.msra.mxu0 0.0
      %861 = vmatprep.subr.mxu0 0.0
      %862 = vmatpush2.msra.mxu0 0.0
      %863 = vmatprep.subr.mxu0 0.0
      %864 = vmatpush2.msra.mxu0 0.0
      %865 = vmatprep.subr.mxu0 0.0
      %866 = vmatpush2.msra.mxu0 0.0
      %867 = vmatprep.subr.mxu0 0.0
      %868 = vmatpush2.msra.mxu0 0.0
      %869 = vmatprep.subr.mxu0 0.0
      %870 = vmatpush2.msra.mxu0 0.0
      %871 = vmatprep.subr.mxu0 0.0
      %872 = vmatpush2.msra.mxu0 0.0
      %873 = vmatprep.subr.mxu0 0.0
      %874 = vmatpush2.msra.mxu0 0.0
      %875 = vmatprep.subr.mxu0 0.0
      %876 = vmatpush2.msra.mxu0 0.0
      %877 = vmatprep.subr.mxu0 0.0
      %878 = vmatpush2.msra.mxu0 0.0
      %879 = vmatprep.subr.mxu0 0.0
      %880 = vmatpush2.msra.mxu0 0.0
      %881 = vmatprep.subr.mxu0 0.0
      %882 = vmatpush2.msra.mxu0 0.0
      %883 = vmatprep.subr.mxu0 0.0
      %884 = vmatpush2.msra.mxu0 0.0
      %885 = vmatprep.mubr.f32.mxu0 0.0
      %886 = vmatmul.mubr.f32.gmra.mxu0 %v819
      %v887 = vpop.f32.mrf.mxu0
      %v888 = vadd.f32 0.0, %v887
      %v889 = vpop.f32.mrf.mxu0
      %890 = vdwg.mxu0
      %v891 = vadd.f32 %v813, %v888
      %v892 = vadd.f32 %v891, %v429
      %s893 = scalar_lea.vmem %s175, 16
      %894 = vst [vmem:[%s893] sm:$0xff] %v892
      %s895 = scalar_lea.vmem %s169, 48
      %v896 = vld [vmem:[%s895] sm:$0xff]
      %v897 = vld [vmem:[%s895 + $0x8] sm:$0x3]
      %v900 = vrot.slane %v896, 1
      %v901 = vrot.slane %v897, 1
      %v902 = vsel %vm199, %v900, %v901
      %v903 = vsel %vm203, %v902, 0
      %905 = vmatprep.subr.mxu0 0.0
      %906 = vmatpush1.msra.mxu0 0.0
      %907 = vmatprep.subr.mxu0 0.0
      %908 = vmatpush1.msra.mxu0 0.0
      %909 = vmatprep.subr.mxu0 0.0
      %910 = vmatpush1.msra.mxu0 0.0
      %911 = vmatprep.subr.mxu0 0.0
      %912 = vmatpush1.msra.mxu0 0.0
      %913 = vmatprep.subr.mxu0 0.0
      %914 = vmatpush1.msra.mxu0 0.0
      %915 = vmatprep.subr.mxu0 0.0
      %916 = vmatpush1.msra.mxu0 0.0
      %917 = vmatprep.subr.mxu0 0.0
      %918 = vmatpush1.msra.mxu0 0.0
      %919 = vmatprep.subr.mxu0 0.0
      %920 = vmatpush1.msra.mxu0 0.0
      %921 = vmatprep.subr.mxu0 0.0
      %922 = vmatpush1.msra.mxu0 0.0
      %923 = vmatprep.subr.mxu0 0.0
      %924 = vmatpush1.msra.mxu0 0.0
      %925 = vmatprep.subr.mxu0 0.0
      %926 = vmatpush1.msra.mxu0 0.0
      %927 = vmatprep.subr.mxu0 0.0
      %928 = vmatpush1.msra.mxu0 %v188
      %929 = vmatprep.subr.mxu0 0.0
      %930 = vmatpush1.msra.mxu0 %v187
      %931 = vmatprep.subr.mxu0 0.0
      %932 = vmatpush1.msra.mxu0 %v186
      %933 = vmatprep.subr.mxu0 0.0
      %934 = vmatpush1.msra.mxu0 %v185
      %935 = vmatprep.subr.mxu0 0.0
      %936 = vmatpush1.msra.mxu0 %v184
      %937 = vmatprep.subr.mxu0 0.0
      %938 = vmatpush2.msra.mxu0 0.0
      %939 = vmatprep.subr.mxu0 0.0
      %940 = vmatpush2.msra.mxu0 0.0
      %941 = vmatprep.subr.mxu0 0.0
      %942 = vmatpush2.msra.mxu0 0.0
      %943 = vmatprep.subr.mxu0 0.0
      %944 = vmatpush2.msra.mxu0 0.0
      %945 = vmatprep.subr.mxu0 0.0
      %946 = vmatpush2.msra.mxu0 0.0
      %947 = vmatprep.subr.mxu0 0.0
      %948 = vmatpush2.msra.mxu0 0.0
      %949 = vmatprep.subr.mxu0 0.0
      %950 = vmatpush2.msra.mxu0 0.0
      %951 = vmatprep.subr.mxu0 0.0
      %952 = vmatpush2.msra.mxu0 0.0
      %953 = vmatprep.subr.mxu0 0.0
      %954 = vmatpush2.msra.mxu0 0.0
      %955 = vmatprep.subr.mxu0 0.0
      %956 = vmatpush2.msra.mxu0 0.0
      %957 = vmatprep.subr.mxu0 0.0
      %958 = vmatpush2.msra.mxu0 0.0
      %959 = vmatprep.subr.mxu0 0.0
      %960 = vmatpush2.msra.mxu0 0.0
      %961 = vmatprep.subr.mxu0 0.0
      %962 = vmatpush2.msra.mxu0 0.0
      %963 = vmatprep.subr.mxu0 0.0
      %964 = vmatpush2.msra.mxu0 0.0
      %965 = vmatprep.subr.mxu0 0.0
      %966 = vmatpush2.msra.mxu0 0.0
      %967 = vmatprep.subr.mxu0 0.0
      %968 = vmatpush2.msra.mxu0 0.0
      %969 = vmatprep.mubr.f32.mxu0 0.0
      %970 = vmatmul.mubr.f32.gmra.mxu0 %v903
      %v971 = vpop.f32.mrf.mxu0
      %v972 = vadd.f32 0.0, %v971
      %v973 = vpop.f32.mrf.mxu0
      %974 = vdwg.mxu0
      %v975 = vsel %vm203, %v896, 0
      %977 = vmatprep.subr.mxu0 0.0
      %978 = vmatpush1.msra.mxu0 0.0
      %979 = vmatprep.subr.mxu0 0.0
      %980 = vmatpush1.msra.mxu0 0.0
      %981 = vmatprep.subr.mxu0 0.0
      %982 = vmatpush1.msra.mxu0 0.0
      %983 = vmatprep.subr.mxu0 0.0
      %984 = vmatpush1.msra.mxu0 0.0
      %985 = vmatprep.subr.mxu0 0.0
      %986 = vmatpush1.msra.mxu0 0.0
      %987 = vmatprep.subr.mxu0 0.0
      %988 = vmatpush1.msra.mxu0 0.0
      %989 = vmatprep.subr.mxu0 0.0
      %990 = vmatpush1.msra.mxu0 0.0
      %991 = vmatprep.subr.mxu0 0.0
      %992 = vmatpush1.msra.mxu0 0.0
      %993 = vmatprep.subr.mxu0 0.0
      %994 = vmatpush1.msra.mxu0 0.0
      %995 = vmatprep.subr.mxu0 0.0
      %996 = vmatpush1.msra.mxu0 0.0
      %997 = vmatprep.subr.mxu0 0.0
      %998 = vmatpush1.msra.mxu0 0.0
      %999 = vmatprep.subr.mxu0 0.0
      %1000 = vmatpush1.msra.mxu0 %v182
      %1001 = vmatprep.subr.mxu0 0.0
      %1002 = vmatpush1.msra.mxu0 %v181
      %1003 = vmatprep.subr.mxu0 0.0
      %1004 = vmatpush1.msra.mxu0 %v180
      %1005 = vmatprep.subr.mxu0 0.0
      %1006 = vmatpush1.msra.mxu0 %v179
      %1007 = vmatprep.subr.mxu0 0.0
      %1008 = vmatpush1.msra.mxu0 %v178
      %1009 = vmatprep.subr.mxu0 0.0
      %1010 = vmatpush2.msra.mxu0 0.0
      %1011 = vmatprep.subr.mxu0 0.0
      %1012 = vmatpush2.msra.mxu0 0.0
      %1013 = vmatprep.subr.mxu0 0.0
      %1014 = vmatpush2.msra.mxu0 0.0
      %1015 = vmatprep.subr.mxu0 0.0
      %1016 = vmatpush2.msra.mxu0 0.0
      %1017 = vmatprep.subr.mxu0 0.0
      %1018 = vmatpush2.msra.mxu0 0.0
      %1019 = vmatprep.subr.mxu0 0.0
      %1020 = vmatpush2.msra.mxu0 0.0
      %1021 = vmatprep.subr.mxu0 0.0
      %1022 = vmatpush2.msra.mxu0 0.0
      %1023 = vmatprep.subr.mxu0 0.0
      %1024 = vmatpush2.msra.mxu0 0.0
      %1025 = vmatprep.subr.mxu0 0.0
      %1026 = vmatpush2.msra.mxu0 0.0
      %1027 = vmatprep.subr.mxu0 0.0
      %1028 = vmatpush2.msra.mxu0 0.0
      %1029 = vmatprep.subr.mxu0 0.0
      %1030 = vmatpush2.msra.mxu0 0.0
      %1031 = vmatprep.subr.mxu0 0.0
      %1032 = vmatpush2.msra.mxu0 0.0
      %1033 = vmatprep.subr.mxu0 0.0
      %1034 = vmatpush2.msra.mxu0 0.0
      %1035 = vmatprep.subr.mxu0 0.0
      %1036 = vmatpush2.msra.mxu0 0.0
      %1037 = vmatprep.subr.mxu0 0.0
      %1038 = vmatpush2.msra.mxu0 0.0
      %1039 = vmatprep.subr.mxu0 0.0
      %1040 = vmatpush2.msra.mxu0 0.0
      %1041 = vmatprep.mubr.f32.mxu0 0.0
      %1042 = vmatmul.mubr.f32.gmra.mxu0 %v975
      %v1043 = vpop.f32.mrf.mxu0
      %v1044 = vadd.f32 %v972, %v1043
      %v1045 = vpop.f32.mrf.mxu0
      %1046 = vdwg.mxu0
      %v1047 = vrot.slane %v896, 2
      %v1048 = vrot.slane %v897, 2
      %v1049 = vsel %vm348, %v1047, %v1048
      %v1050 = vsel %vm203, %v1049, 0
      %1052 = vmatprep.subr.mxu0 0.0
      %1053 = vmatpush1.msra.mxu0 0.0
      %1054 = vmatprep.subr.mxu0 0.0
      %1055 = vmatpush1.msra.mxu0 0.0
      %1056 = vmatprep.subr.mxu0 0.0
      %1057 = vmatpush1.msra.mxu0 0.0
      %1058 = vmatprep.subr.mxu0 0.0
      %1059 = vmatpush1.msra.mxu0 0.0
      %1060 = vmatprep.subr.mxu0 0.0
      %1061 = vmatpush1.msra.mxu0 0.0
      %1062 = vmatprep.subr.mxu0 0.0
      %1063 = vmatpush1.msra.mxu0 0.0
      %1064 = vmatprep.subr.mxu0 0.0
      %1065 = vmatpush1.msra.mxu0 0.0
      %1066 = vmatprep.subr.mxu0 0.0
      %1067 = vmatpush1.msra.mxu0 0.0
      %1068 = vmatprep.subr.mxu0 0.0
      %1069 = vmatpush1.msra.mxu0 0.0
      %1070 = vmatprep.subr.mxu0 0.0
      %1071 = vmatpush1.msra.mxu0 0.0
      %1072 = vmatprep.subr.mxu0 0.0
      %1073 = vmatpush1.msra.mxu0 0.0
      %1074 = vmatprep.subr.mxu0 0.0
      %1075 = vmatpush1.msra.mxu0 %v194
      %1076 = vmatprep.subr.mxu0 0.0
      %1077 = vmatpush1.msra.mxu0 %v193
      %1078 = vmatprep.subr.mxu0 0.0
      %1079 = vmatpush1.msra.mxu0 %v192
      %1080 = vmatprep.subr.mxu0 0.0
      %1081 = vmatpush1.msra.mxu0 %v191
      %1082 = vmatprep.subr.mxu0 0.0
      %1083 = vmatpush1.msra.mxu0 %v190
      %1084 = vmatprep.subr.mxu0 0.0
      %1085 = vmatpush2.msra.mxu0 0.0
      %1086 = vmatprep.subr.mxu0 0.0
      %1087 = vmatpush2.msra.mxu0 0.0
      %1088 = vmatprep.subr.mxu0 0.0
      %1089 = vmatpush2.msra.mxu0 0.0
      %1090 = vmatprep.subr.mxu0 0.0
      %1091 = vmatpush2.msra.mxu0 0.0
      %1092 = vmatprep.subr.mxu0 0.0
      %1093 = vmatpush2.msra.mxu0 0.0
      %1094 = vmatprep.subr.mxu0 0.0
      %1095 = vmatpush2.msra.mxu0 0.0
      %1096 = vmatprep.subr.mxu0 0.0
      %1097 = vmatpush2.msra.mxu0 0.0
      %1098 = vmatprep.subr.mxu0 0.0
      %1099 = vmatpush2.msra.mxu0 0.0
      %1100 = vmatprep.subr.mxu0 0.0
      %1101 = vmatpush2.msra.mxu0 0.0
      %1102 = vmatprep.subr.mxu0 0.0
      %1103 = vmatpush2.msra.mxu0 0.0
      %1104 = vmatprep.subr.mxu0 0.0
      %1105 = vmatpush2.msra.mxu0 0.0
      %1106 = vmatprep.subr.mxu0 0.0
      %1107 = vmatpush2.msra.mxu0 0.0
      %1108 = vmatprep.subr.mxu0 0.0
      %1109 = vmatpush2.msra.mxu0 0.0
      %1110 = vmatprep.subr.mxu0 0.0
      %1111 = vmatpush2.msra.mxu0 0.0
      %1112 = vmatprep.subr.mxu0 0.0
      %1113 = vmatpush2.msra.mxu0 0.0
      %1114 = vmatprep.subr.mxu0 0.0
      %1115 = vmatpush2.msra.mxu0 0.0
      %1116 = vmatprep.mubr.f32.mxu0 0.0
      %1117 = vmatmul.mubr.f32.gmra.mxu0 %v1050
      %v1118 = vpop.f32.mrf.mxu0
      %v1119 = vadd.f32 0.0, %v1118
      %v1120 = vpop.f32.mrf.mxu0
      %1121 = vdwg.mxu0
      %v1122 = vadd.f32 %v1044, %v1119
      %v1123 = vadd.f32 %v1122, %v429
      %s1124 = scalar_lea.vmem %s175, 24
      %1125 = vst [vmem:[%s1124] sm:$0xff] %v1123
      %s1126 = scalar_lea.vmem %s169, 64
      %v1127 = vld [vmem:[%s1126] sm:$0xff]
      %v1128 = vld [vmem:[%s1126 + $0x8] sm:$0x3]
      %v1131 = vrot.slane %v1127, 1
      %v1132 = vrot.slane %v1128, 1
      %v1133 = vsel %vm199, %v1131, %v1132
      %v1134 = vsel %vm203, %v1133, 0
      %1136 = vmatprep.subr.mxu0 0.0
      %1137 = vmatpush1.msra.mxu0 0.0
      %1138 = vmatprep.subr.mxu0 0.0
      %1139 = vmatpush1.msra.mxu0 0.0
      %1140 = vmatprep.subr.mxu0 0.0
      %1141 = vmatpush1.msra.mxu0 0.0
      %1142 = vmatprep.subr.mxu0 0.0
      %1143 = vmatpush1.msra.mxu0 0.0
      %1144 = vmatprep.subr.mxu0 0.0
      %1145 = vmatpush1.msra.mxu0 0.0
      %1146 = vmatprep.subr.mxu0 0.0
      %1147 = vmatpush1.msra.mxu0 0.0
      %1148 = vmatprep.subr.mxu0 0.0
      %1149 = vmatpush1.msra.mxu0 0.0
      %1150 = vmatprep.subr.mxu0 0.0
      %1151 = vmatpush1.msra.mxu0 0.0
      %1152 = vmatprep.subr.mxu0 0.0
      %1153 = vmatpush1.msra.mxu0 0.0
      %1154 = vmatprep.subr.mxu0 0.0
      %1155 = vmatpush1.msra.mxu0 0.0
      %1156 = vmatprep.subr.mxu0 0.0
      %1157 = vmatpush1.msra.mxu0 0.0
      %1158 = vmatprep.subr.mxu0 0.0
      %1159 = vmatpush1.msra.mxu0 %v188
      %1160 = vmatprep.subr.mxu0 0.0
      %1161 = vmatpush1.msra.mxu0 %v187
      %1162 = vmatprep.subr.mxu0 0.0
      %1163 = vmatpush1.msra.mxu0 %v186
      %1164 = vmatprep.subr.mxu0 0.0
      %1165 = vmatpush1.msra.mxu0 %v185
      %1166 = vmatprep.subr.mxu0 0.0
      %1167 = vmatpush1.msra.mxu0 %v184
      %1168 = vmatprep.subr.mxu0 0.0
      %1169 = vmatpush2.msra.mxu0 0.0
      %1170 = vmatprep.subr.mxu0 0.0
      %1171 = vmatpush2.msra.mxu0 0.0
      %1172 = vmatprep.subr.mxu0 0.0
      %1173 = vmatpush2.msra.mxu0 0.0
      %1174 = vmatprep.subr.mxu0 0.0
      %1175 = vmatpush2.msra.mxu0 0.0
      %1176 = vmatprep.subr.mxu0 0.0
      %1177 = vmatpush2.msra.mxu0 0.0
      %1178 = vmatprep.subr.mxu0 0.0
      %1179 = vmatpush2.msra.mxu0 0.0
      %1180 = vmatprep.subr.mxu0 0.0
      %1181 = vmatpush2.msra.mxu0 0.0
      %1182 = vmatprep.subr.mxu0 0.0
      %1183 = vmatpush2.msra.mxu0 0.0
      %1184 = vmatprep.subr.mxu0 0.0
      %1185 = vmatpush2.msra.mxu0 0.0
      %1186 = vmatprep.subr.mxu0 0.0
      %1187 = vmatpush2.msra.mxu0 0.0
      %1188 = vmatprep.subr.mxu0 0.0
      %1189 = vmatpush2.msra.mxu0 0.0
      %1190 = vmatprep.subr.mxu0 0.0
      %1191 = vmatpush2.msra.mxu0 0.0
      %1192 = vmatprep.subr.mxu0 0.0
      %1193 = vmatpush2.msra.mxu0 0.0
      %1194 = vmatprep.subr.mxu0 0.0
      %1195 = vmatpush2.msra.mxu0 0.0
      %1196 = vmatprep.subr.mxu0 0.0
      %1197 = vmatpush2.msra.mxu0 0.0
      %1198 = vmatprep.subr.mxu0 0.0
      %1199 = vmatpush2.msra.mxu0 0.0
      %1200 = vmatprep.mubr.f32.mxu0 0.0
      %1201 = vmatmul.mubr.f32.gmra.mxu0 %v1134
      %v1202 = vpop.f32.mrf.mxu0
      %v1203 = vadd.f32 0.0, %v1202
      %v1204 = vpop.f32.mrf.mxu0
      %1205 = vdwg.mxu0
      %v1206 = vsel %vm203, %v1127, 0
      %1208 = vmatprep.subr.mxu0 0.0
      %1209 = vmatpush1.msra.mxu0 0.0
      %1210 = vmatprep.subr.mxu0 0.0
      %1211 = vmatpush1.msra.mxu0 0.0
      %1212 = vmatprep.subr.mxu0 0.0
      %1213 = vmatpush1.msra.mxu0 0.0
      %1214 = vmatprep.subr.mxu0 0.0
      %1215 = vmatpush1.msra.mxu0 0.0
      %1216 = vmatprep.subr.mxu0 0.0
      %1217 = vmatpush1.msra.mxu0 0.0
      %1218 = vmatprep.subr.mxu0 0.0
      %1219 = vmatpush1.msra.mxu0 0.0
      %1220 = vmatprep.subr.mxu0 0.0
      %1221 = vmatpush1.msra.mxu0 0.0
      %1222 = vmatprep.subr.mxu0 0.0
      %1223 = vmatpush1.msra.mxu0 0.0
      %1224 = vmatprep.subr.mxu0 0.0
      %1225 = vmatpush1.msra.mxu0 0.0
      %1226 = vmatprep.subr.mxu0 0.0
      %1227 = vmatpush1.msra.mxu0 0.0
      %1228 = vmatprep.subr.mxu0 0.0
      %1229 = vmatpush1.msra.mxu0 0.0
      %1230 = vmatprep.subr.mxu0 0.0
      %1231 = vmatpush1.msra.mxu0 %v182
      %1232 = vmatprep.subr.mxu0 0.0
      %1233 = vmatpush1.msra.mxu0 %v181
      %1234 = vmatprep.subr.mxu0 0.0
      %1235 = vmatpush1.msra.mxu0 %v180
      %1236 = vmatprep.subr.mxu0 0.0
      %1237 = vmatpush1.msra.mxu0 %v179
      %1238 = vmatprep.subr.mxu0 0.0
      %1239 = vmatpush1.msra.mxu0 %v178
      %1240 = vmatprep.subr.mxu0 0.0
      %1241 = vmatpush2.msra.mxu0 0.0
      %1242 = vmatprep.subr.mxu0 0.0
      %1243 = vmatpush2.msra.mxu0 0.0
      %1244 = vmatprep.subr.mxu0 0.0
      %1245 = vmatpush2.msra.mxu0 0.0
      %1246 = vmatprep.subr.mxu0 0.0
      %1247 = vmatpush2.msra.mxu0 0.0
      %1248 = vmatprep.subr.mxu0 0.0
      %1249 = vmatpush2.msra.mxu0 0.0
      %1250 = vmatprep.subr.mxu0 0.0
      %1251 = vmatpush2.msra.mxu0 0.0
      %1252 = vmatprep.subr.mxu0 0.0
      %1253 = vmatpush2.msra.mxu0 0.0
      %1254 = vmatprep.subr.mxu0 0.0
      %1255 = vmatpush2.msra.mxu0 0.0
      %1256 = vmatprep.subr.mxu0 0.0
      %1257 = vmatpush2.msra.mxu0 0.0
      %1258 = vmatprep.subr.mxu0 0.0
      %1259 = vmatpush2.msra.mxu0 0.0
      %1260 = vmatprep.subr.mxu0 0.0
      %1261 = vmatpush2.msra.mxu0 0.0
      %1262 = vmatprep.subr.mxu0 0.0
      %1263 = vmatpush2.msra.mxu0 0.0
      %1264 = vmatprep.subr.mxu0 0.0
      %1265 = vmatpush2.msra.mxu0 0.0
      %1266 = vmatprep.subr.mxu0 0.0
      %1267 = vmatpush2.msra.mxu0 0.0
      %1268 = vmatprep.subr.mxu0 0.0
      %1269 = vmatpush2.msra.mxu0 0.0
      %1270 = vmatprep.subr.mxu0 0.0
      %1271 = vmatpush2.msra.mxu0 0.0
      %1272 = vmatprep.mubr.f32.mxu0 0.0
      %1273 = vmatmul.mubr.f32.gmra.mxu0 %v1206
      %v1274 = vpop.f32.mrf.mxu0
      %v1275 = vadd.f32 %v1203, %v1274
      %v1276 = vpop.f32.mrf.mxu0
      %1277 = vdwg.mxu0
      %v1278 = vrot.slane %v1127, 2
      %v1279 = vrot.slane %v1128, 2
      %v1280 = vsel %vm348, %v1278, %v1279
      %v1281 = vsel %vm203, %v1280, 0
      %1283 = vmatprep.subr.mxu0 0.0
      %1284 = vmatpush1.msra.mxu0 0.0
      %1285 = vmatprep.subr.mxu0 0.0
      %1286 = vmatpush1.msra.mxu0 0.0
      %1287 = vmatprep.subr.mxu0 0.0
      %1288 = vmatpush1.msra.mxu0 0.0
      %1289 = vmatprep.subr.mxu0 0.0
      %1290 = vmatpush1.msra.mxu0 0.0
      %1291 = vmatprep.subr.mxu0 0.0
      %1292 = vmatpush1.msra.mxu0 0.0
      %1293 = vmatprep.subr.mxu0 0.0
      %1294 = vmatpush1.msra.mxu0 0.0
      %1295 = vmatprep.subr.mxu0 0.0
      %1296 = vmatpush1.msra.mxu0 0.0
      %1297 = vmatprep.subr.mxu0 0.0
      %1298 = vmatpush1.msra.mxu0 0.0
      %1299 = vmatprep.subr.mxu0 0.0
      %1300 = vmatpush1.msra.mxu0 0.0
      %1301 = vmatprep.subr.mxu0 0.0
      %1302 = vmatpush1.msra.mxu0 0.0
      %1303 = vmatprep.subr.mxu0 0.0
      %1304 = vmatpush1.msra.mxu0 0.0
      %1305 = vmatprep.subr.mxu0 0.0
      %1306 = vmatpush1.msra.mxu0 %v194
      %1307 = vmatprep.subr.mxu0 0.0
      %1308 = vmatpush1.msra.mxu0 %v193
      %1309 = vmatprep.subr.mxu0 0.0
      %1310 = vmatpush1.msra.mxu0 %v192
      %1311 = vmatprep.subr.mxu0 0.0
      %1312 = vmatpush1.msra.mxu0 %v191
      %1313 = vmatprep.subr.mxu0 0.0
      %1314 = vmatpush1.msra.mxu0 %v190
      %1315 = vmatprep.subr.mxu0 0.0
      %1316 = vmatpush2.msra.mxu0 0.0
      %1317 = vmatprep.subr.mxu0 0.0
      %1318 = vmatpush2.msra.mxu0 0.0
      %1319 = vmatprep.subr.mxu0 0.0
      %1320 = vmatpush2.msra.mxu0 0.0
      %1321 = vmatprep.subr.mxu0 0.0
      %1322 = vmatpush2.msra.mxu0 0.0
      %1323 = vmatprep.subr.mxu0 0.0
      %1324 = vmatpush2.msra.mxu0 0.0
      %1325 = vmatprep.subr.mxu0 0.0
      %1326 = vmatpush2.msra.mxu0 0.0
      %1327 = vmatprep.subr.mxu0 0.0
      %1328 = vmatpush2.msra.mxu0 0.0
      %1329 = vmatprep.subr.mxu0 0.0
      %1330 = vmatpush2.msra.mxu0 0.0
      %1331 = vmatprep.subr.mxu0 0.0
      %1332 = vmatpush2.msra.mxu0 0.0
      %1333 = vmatprep.subr.mxu0 0.0
      %1334 = vmatpush2.msra.mxu0 0.0
      %1335 = vmatprep.subr.mxu0 0.0
      %1336 = vmatpush2.msra.mxu0 0.0
      %1337 = vmatprep.subr.mxu0 0.0
      %1338 = vmatpush2.msra.mxu0 0.0
      %1339 = vmatprep.subr.mxu0 0.0
      %1340 = vmatpush2.msra.mxu0 0.0
      %1341 = vmatprep.subr.mxu0 0.0
      %1342 = vmatpush2.msra.mxu0 0.0
      %1343 = vmatprep.subr.mxu0 0.0
      %1344 = vmatpush2.msra.mxu0 0.0
      %1345 = vmatprep.subr.mxu0 0.0
      %1346 = vmatpush2.msra.mxu0 0.0
      %1347 = vmatprep.mubr.f32.mxu0 0.0
      %1348 = vmatmul.mubr.f32.gmra.mxu0 %v1281
      %v1349 = vpop.f32.mrf.mxu0
      %v1350 = vadd.f32 0.0, %v1349
      %v1351 = vpop.f32.mrf.mxu0
      %1352 = vdwg.mxu0
      %v1353 = vadd.f32 %v1275, %v1350
      %v1354 = vadd.f32 %v1353, %v429
      %s1355 = scalar_lea.vmem %s175, 32
      %1356 = vst [vmem:[%s1355] sm:$0xff] %v1354
      %s1357 = scalar_lea.vmem %s169, 80
      %v1358 = vld [vmem:[%s1357] sm:$0xff]
      %v1359 = vld [vmem:[%s1357 + $0x8] sm:$0x3]
      %v1362 = vrot.slane %v1358, 1
      %v1363 = vrot.slane %v1359, 1
      %v1364 = vsel %vm199, %v1362, %v1363
      %v1365 = vsel %vm203, %v1364, 0
      %1367 = vmatprep.subr.mxu0 0.0
      %1368 = vmatpush1.msra.mxu0 0.0
      %1369 = vmatprep.subr.mxu0 0.0
      %1370 = vmatpush1.msra.mxu0 0.0
      %1371 = vmatprep.subr.mxu0 0.0
      %1372 = vmatpush1.msra.mxu0 0.0
      %1373 = vmatprep.subr.mxu0 0.0
      %1374 = vmatpush1.msra.mxu0 0.0
      %1375 = vmatprep.subr.mxu0 0.0
      %1376 = vmatpush1.msra.mxu0 0.0
      %1377 = vmatprep.subr.mxu0 0.0
      %1378 = vmatpush1.msra.mxu0 0.0
      %1379 = vmatprep.subr.mxu0 0.0
      %1380 = vmatpush1.msra.mxu0 0.0
      %1381 = vmatprep.subr.mxu0 0.0
      %1382 = vmatpush1.msra.mxu0 0.0
      %1383 = vmatprep.subr.mxu0 0.0
      %1384 = vmatpush1.msra.mxu0 0.0
      %1385 = vmatprep.subr.mxu0 0.0
      %1386 = vmatpush1.msra.mxu0 0.0
      %1387 = vmatprep.subr.mxu0 0.0
      %1388 = vmatpush1.msra.mxu0 0.0
      %1389 = vmatprep.subr.mxu0 0.0
      %1390 = vmatpush1.msra.mxu0 %v188
      %1391 = vmatprep.subr.mxu0 0.0
      %1392 = vmatpush1.msra.mxu0 %v187
      %1393 = vmatprep.subr.mxu0 0.0
      %1394 = vmatpush1.msra.mxu0 %v186
      %1395 = vmatprep.subr.mxu0 0.0
      %1396 = vmatpush1.msra.mxu0 %v185
      %1397 = vmatprep.subr.mxu0 0.0
      %1398 = vmatpush1.msra.mxu0 %v184
      %1399 = vmatprep.subr.mxu0 0.0
      %1400 = vmatpush2.msra.mxu0 0.0
      %1401 = vmatprep.subr.mxu0 0.0
      %1402 = vmatpush2.msra.mxu0 0.0
      %1403 = vmatprep.subr.mxu0 0.0
      %1404 = vmatpush2.msra.mxu0 0.0
      %1405 = vmatprep.subr.mxu0 0.0
      %1406 = vmatpush2.msra.mxu0 0.0
      %1407 = vmatprep.subr.mxu0 0.0
      %1408 = vmatpush2.msra.mxu0 0.0
      %1409 = vmatprep.subr.mxu0 0.0
      %1410 = vmatpush2.msra.mxu0 0.0
      %1411 = vmatprep.subr.mxu0 0.0
      %1412 = vmatpush2.msra.mxu0 0.0
      %1413 = vmatprep.subr.mxu0 0.0
      %1414 = vmatpush2.msra.mxu0 0.0
      %1415 = vmatprep.subr.mxu0 0.0
      %1416 = vmatpush2.msra.mxu0 0.0
      %1417 = vmatprep.subr.mxu0 0.0
      %1418 = vmatpush2.msra.mxu0 0.0
      %1419 = vmatprep.subr.mxu0 0.0
      %1420 = vmatpush2.msra.mxu0 0.0
      %1421 = vmatprep.subr.mxu0 0.0
      %1422 = vmatpush2.msra.mxu0 0.0
      %1423 = vmatprep.subr.mxu0 0.0
      %1424 = vmatpush2.msra.mxu0 0.0
      %1425 = vmatprep.subr.mxu0 0.0
      %1426 = vmatpush2.msra.mxu0 0.0
      %1427 = vmatprep.subr.mxu0 0.0
      %1428 = vmatpush2.msra.mxu0 0.0
      %1429 = vmatprep.subr.mxu0 0.0
      %1430 = vmatpush2.msra.mxu0 0.0
      %1431 = vmatprep.mubr.f32.mxu0 0.0
      %1432 = vmatmul.mubr.f32.gmra.mxu0 %v1365
      %v1433 = vpop.f32.mrf.mxu0
      %v1434 = vadd.f32 0.0, %v1433
      %v1435 = vpop.f32.mrf.mxu0
      %1436 = vdwg.mxu0
      %v1437 = vsel %vm203, %v1358, 0
      %1439 = vmatprep.subr.mxu0 0.0
      %1440 = vmatpush1.msra.mxu0 0.0
      %1441 = vmatprep.subr.mxu0 0.0
      %1442 = vmatpush1.msra.mxu0 0.0
      %1443 = vmatprep.subr.mxu0 0.0
      %1444 = vmatpush1.msra.mxu0 0.0
      %1445 = vmatprep.subr.mxu0 0.0
      %1446 = vmatpush1.msra.mxu0 0.0
      %1447 = vmatprep.subr.mxu0 0.0
      %1448 = vmatpush1.msra.mxu0 0.0
      %1449 = vmatprep.subr.mxu0 0.0
      %1450 = vmatpush1.msra.mxu0 0.0
      %1451 = vmatprep.subr.mxu0 0.0
      %1452 = vmatpush1.msra.mxu0 0.0
      %1453 = vmatprep.subr.mxu0 0.0
      %1454 = vmatpush1.msra.mxu0 0.0
      %1455 = vmatprep.subr.mxu0 0.0
      %1456 = vmatpush1.msra.mxu0 0.0
      %1457 = vmatprep.subr.mxu0 0.0
      %1458 = vmatpush1.msra.mxu0 0.0
      %1459 = vmatprep.subr.mxu0 0.0
      %1460 = vmatpush1.msra.mxu0 0.0
      %1461 = vmatprep.subr.mxu0 0.0
      %1462 = vmatpush1.msra.mxu0 %v182
      %1463 = vmatprep.subr.mxu0 0.0
      %1464 = vmatpush1.msra.mxu0 %v181
      %1465 = vmatprep.subr.mxu0 0.0
      %1466 = vmatpush1.msra.mxu0 %v180
      %1467 = vmatprep.subr.mxu0 0.0
      %1468 = vmatpush1.msra.mxu0 %v179
      %1469 = vmatprep.subr.mxu0 0.0
      %1470 = vmatpush1.msra.mxu0 %v178
      %1471 = vmatprep.subr.mxu0 0.0
      %1472 = vmatpush2.msra.mxu0 0.0
      %1473 = vmatprep.subr.mxu0 0.0
      %1474 = vmatpush2.msra.mxu0 0.0
      %1475 = vmatprep.subr.mxu0 0.0
      %1476 = vmatpush2.msra.mxu0 0.0
      %1477 = vmatprep.subr.mxu0 0.0
      %1478 = vmatpush2.msra.mxu0 0.0
      %1479 = vmatprep.subr.mxu0 0.0
      %1480 = vmatpush2.msra.mxu0 0.0
      %1481 = vmatprep.subr.mxu0 0.0
      %1482 = vmatpush2.msra.mxu0 0.0
      %1483 = vmatprep.subr.mxu0 0.0
      %1484 = vmatpush2.msra.mxu0 0.0
      %1485 = vmatprep.subr.mxu0 0.0
      %1486 = vmatpush2.msra.mxu0 0.0
      %1487 = vmatprep.subr.mxu0 0.0
      %1488 = vmatpush2.msra.mxu0 0.0
      %1489 = vmatprep.subr.mxu0 0.0
      %1490 = vmatpush2.msra.mxu0 0.0
      %1491 = vmatprep.subr.mxu0 0.0
      %1492 = vmatpush2.msra.mxu0 0.0
      %1493 = vmatprep.subr.mxu0 0.0
      %1494 = vmatpush2.msra.mxu0 0.0
      %1495 = vmatprep.subr.mxu0 0.0
      %1496 = vmatpush2.msra.mxu0 0.0
      %1497 = vmatprep.subr.mxu0 0.0
      %1498 = vmatpush2.msra.mxu0 0.0
      %1499 = vmatprep.subr.mxu0 0.0
      %1500 = vmatpush2.msra.mxu0 0.0
      %1501 = vmatprep.subr.mxu0 0.0
      %1502 = vmatpush2.msra.mxu0 0.0
      %1503 = vmatprep.mubr.f32.mxu0 0.0
      %1504 = vmatmul.mubr.f32.gmra.mxu0 %v1437
      %v1505 = vpop.f32.mrf.mxu0
      %v1506 = vadd.f32 %v1434, %v1505
      %v1507 = vpop.f32.mrf.mxu0
      %1508 = vdwg.mxu0
      %v1509 = vrot.slane %v1358, 2
      %v1510 = vrot.slane %v1359, 2
      %v1511 = vsel %vm348, %v1509, %v1510
      %v1512 = vsel %vm203, %v1511, 0
      %1514 = vmatprep.subr.mxu0 0.0
      %1515 = vmatpush1.msra.mxu0 0.0
      %1516 = vmatprep.subr.mxu0 0.0
      %1517 = vmatpush1.msra.mxu0 0.0
      %1518 = vmatprep.subr.mxu0 0.0
      %1519 = vmatpush1.msra.mxu0 0.0
      %1520 = vmatprep.subr.mxu0 0.0
      %1521 = vmatpush1.msra.mxu0 0.0
      %1522 = vmatprep.subr.mxu0 0.0
      %1523 = vmatpush1.msra.mxu0 0.0
      %1524 = vmatprep.subr.mxu0 0.0
      %1525 = vmatpush1.msra.mxu0 0.0
      %1526 = vmatprep.subr.mxu0 0.0
      %1527 = vmatpush1.msra.mxu0 0.0
      %1528 = vmatprep.subr.mxu0 0.0
      %1529 = vmatpush1.msra.mxu0 0.0
      %1530 = vmatprep.subr.mxu0 0.0
      %1531 = vmatpush1.msra.mxu0 0.0
      %1532 = vmatprep.subr.mxu0 0.0
      %1533 = vmatpush1.msra.mxu0 0.0
      %1534 = vmatprep.subr.mxu0 0.0
      %1535 = vmatpush1.msra.mxu0 0.0
      %1536 = vmatprep.subr.mxu0 0.0
      %1537 = vmatpush1.msra.mxu0 %v194
      %1538 = vmatprep.subr.mxu0 0.0
      %1539 = vmatpush1.msra.mxu0 %v193
      %1540 = vmatprep.subr.mxu0 0.0
      %1541 = vmatpush1.msra.mxu0 %v192
      %1542 = vmatprep.subr.mxu0 0.0
      %1543 = vmatpush1.msra.mxu0 %v191
      %1544 = vmatprep.subr.mxu0 0.0
      %1545 = vmatpush1.msra.mxu0 %v190
      %1546 = vmatprep.subr.mxu0 0.0
      %1547 = vmatpush2.msra.mxu0 0.0
      %1548 = vmatprep.subr.mxu0 0.0
      %1549 = vmatpush2.msra.mxu0 0.0
      %1550 = vmatprep.subr.mxu0 0.0
      %1551 = vmatpush2.msra.mxu0 0.0
      %1552 = vmatprep.subr.mxu0 0.0
      %1553 = vmatpush2.msra.mxu0 0.0
      %1554 = vmatprep.subr.mxu0 0.0
      %1555 = vmatpush2.msra.mxu0 0.0
      %1556 = vmatprep.subr.mxu0 0.0
      %1557 = vmatpush2.msra.mxu0 0.0
      %1558 = vmatprep.subr.mxu0 0.0
      %1559 = vmatpush2.msra.mxu0 0.0
      %1560 = vmatprep.subr.mxu0 0.0
      %1561 = vmatpush2.msra.mxu0 0.0
      %1562 = vmatprep.subr.mxu0 0.0
      %1563 = vmatpush2.msra.mxu0 0.0
      %1564 = vmatprep.subr.mxu0 0.0
      %1565 = vmatpush2.msra.mxu0 0.0
      %1566 = vmatprep.subr.mxu0 0.0
      %1567 = vmatpush2.msra.mxu0 0.0
      %1568 = vmatprep.subr.mxu0 0.0
      %1569 = vmatpush2.msra.mxu0 0.0
      %1570 = vmatprep.subr.mxu0 0.0
      %1571 = vmatpush2.msra.mxu0 0.0
      %1572 = vmatprep.subr.mxu0 0.0
      %1573 = vmatpush2.msra.mxu0 0.0
      %1574 = vmatprep.subr.mxu0 0.0
      %1575 = vmatpush2.msra.mxu0 0.0
      %1576 = vmatprep.subr.mxu0 0.0
      %1577 = vmatpush2.msra.mxu0 0.0
      %1578 = vmatprep.mubr.f32.mxu0 0.0
      %1579 = vmatmul.mubr.f32.gmra.mxu0 %v1512
      %v1580 = vpop.f32.mrf.mxu0
      %v1581 = vadd.f32 0.0, %v1580
      %v1582 = vpop.f32.mrf.mxu0
      %1583 = vdwg.mxu0
      %v1584 = vadd.f32 %v1506, %v1581
      %v1585 = vadd.f32 %v1584, %v429
      %s1586 = scalar_lea.vmem %s175, 40
      %1587 = vst [vmem:[%s1586] sm:$0xff] %v1585
      %s1588 = scalar_lea.vmem %s169, 96
      %v1589 = vld [vmem:[%s1588] sm:$0xff]
      %v1590 = vld [vmem:[%s1588 + $0x8] sm:$0x3]
      %v1593 = vrot.slane %v1589, 1
      %v1594 = vrot.slane %v1590, 1
      %v1595 = vsel %vm199, %v1593, %v1594
      %v1596 = vsel %vm203, %v1595, 0
      %1598 = vmatprep.subr.mxu0 0.0
      %1599 = vmatpush1.msra.mxu0 0.0
      %1600 = vmatprep.subr.mxu0 0.0
      %1601 = vmatpush1.msra.mxu0 0.0
      %1602 = vmatprep.subr.mxu0 0.0
      %1603 = vmatpush1.msra.mxu0 0.0
      %1604 = vmatprep.subr.mxu0 0.0
      %1605 = vmatpush1.msra.mxu0 0.0
      %1606 = vmatprep.subr.mxu0 0.0
      %1607 = vmatpush1.msra.mxu0 0.0
      %1608 = vmatprep.subr.mxu0 0.0
      %1609 = vmatpush1.msra.mxu0 0.0
      %1610 = vmatprep.subr.mxu0 0.0
      %1611 = vmatpush1.msra.mxu0 0.0
      %1612 = vmatprep.subr.mxu0 0.0
      %1613 = vmatpush1.msra.mxu0 0.0
      %1614 = vmatprep.subr.mxu0 0.0
      %1615 = vmatpush1.msra.mxu0 0.0
      %1616 = vmatprep.subr.mxu0 0.0
      %1617 = vmatpush1.msra.mxu0 0.0
      %1618 = vmatprep.subr.mxu0 0.0
      %1619 = vmatpush1.msra.mxu0 0.0
      %1620 = vmatprep.subr.mxu0 0.0
      %1621 = vmatpush1.msra.mxu0 %v188
      %1622 = vmatprep.subr.mxu0 0.0
      %1623 = vmatpush1.msra.mxu0 %v187
      %1624 = vmatprep.subr.mxu0 0.0
      %1625 = vmatpush1.msra.mxu0 %v186
      %1626 = vmatprep.subr.mxu0 0.0
      %1627 = vmatpush1.msra.mxu0 %v185
      %1628 = vmatprep.subr.mxu0 0.0
      %1629 = vmatpush1.msra.mxu0 %v184
      %1630 = vmatprep.subr.mxu0 0.0
      %1631 = vmatpush2.msra.mxu0 0.0
      %1632 = vmatprep.subr.mxu0 0.0
      %1633 = vmatpush2.msra.mxu0 0.0
      %1634 = vmatprep.subr.mxu0 0.0
      %1635 = vmatpush2.msra.mxu0 0.0
      %1636 = vmatprep.subr.mxu0 0.0
      %1637 = vmatpush2.msra.mxu0 0.0
      %1638 = vmatprep.subr.mxu0 0.0
      %1639 = vmatpush2.msra.mxu0 0.0
      %1640 = vmatprep.subr.mxu0 0.0
      %1641 = vmatpush2.msra.mxu0 0.0
      %1642 = vmatprep.subr.mxu0 0.0
      %1643 = vmatpush2.msra.mxu0 0.0
      %1644 = vmatprep.subr.mxu0 0.0
      %1645 = vmatpush2.msra.mxu0 0.0
      %1646 = vmatprep.subr.mxu0 0.0
      %1647 = vmatpush2.msra.mxu0 0.0
      %1648 = vmatprep.subr.mxu0 0.0
      %1649 = vmatpush2.msra.mxu0 0.0
      %1650 = vmatprep.subr.mxu0 0.0
      %1651 = vmatpush2.msra.mxu0 0.0
      %1652 = vmatprep.subr.mxu0 0.0
      %1653 = vmatpush2.msra.mxu0 0.0
      %1654 = vmatprep.subr.mxu0 0.0
      %1655 = vmatpush2.msra.mxu0 0.0
      %1656 = vmatprep.subr.mxu0 0.0
      %1657 = vmatpush2.msra.mxu0 0.0
      %1658 = vmatprep.subr.mxu0 0.0
      %1659 = vmatpush2.msra.mxu0 0.0
      %1660 = vmatprep.subr.mxu0 0.0
      %1661 = vmatpush2.msra.mxu0 0.0
      %1662 = vmatprep.mubr.f32.mxu0 0.0
      %1663 = vmatmul.mubr.f32.gmra.mxu0 %v1596
      %v1664 = vpop.f32.mrf.mxu0
      %v1665 = vadd.f32 0.0, %v1664
      %v1666 = vpop.f32.mrf.mxu0
      %1667 = vdwg.mxu0
      %v1668 = vsel %vm203, %v1589, 0
      %1670 = vmatprep.subr.mxu0 0.0
      %1671 = vmatpush1.msra.mxu0 0.0
      %1672 = vmatprep.subr.mxu0 0.0
      %1673 = vmatpush1.msra.mxu0 0.0
      %1674 = vmatprep.subr.mxu0 0.0
      %1675 = vmatpush1.msra.mxu0 0.0
      %1676 = vmatprep.subr.mxu0 0.0
      %1677 = vmatpush1.msra.mxu0 0.0
      %1678 = vmatprep.subr.mxu0 0.0
      %1679 = vmatpush1.msra.mxu0 0.0
      %1680 = vmatprep.subr.mxu0 0.0
      %1681 = vmatpush1.msra.mxu0 0.0
      %1682 = vmatprep.subr.mxu0 0.0
      %1683 = vmatpush1.msra.mxu0 0.0
      %1684 = vmatprep.subr.mxu0 0.0
      %1685 = vmatpush1.msra.mxu0 0.0
      %1686 = vmatprep.subr.mxu0 0.0
      %1687 = vmatpush1.msra.mxu0 0.0
      %1688 = vmatprep.subr.mxu0 0.0
      %1689 = vmatpush1.msra.mxu0 0.0
      %1690 = vmatprep.subr.mxu0 0.0
      %1691 = vmatpush1.msra.mxu0 0.0
      %1692 = vmatprep.subr.mxu0 0.0
      %1693 = vmatpush1.msra.mxu0 %v182
      %1694 = vmatprep.subr.mxu0 0.0
      %1695 = vmatpush1.msra.mxu0 %v181
      %1696 = vmatprep.subr.mxu0 0.0
      %1697 = vmatpush1.msra.mxu0 %v180
      %1698 = vmatprep.subr.mxu0 0.0
      %1699 = vmatpush1.msra.mxu0 %v179
      %1700 = vmatprep.subr.mxu0 0.0
      %1701 = vmatpush1.msra.mxu0 %v178
      %1702 = vmatprep.subr.mxu0 0.0
      %1703 = vmatpush2.msra.mxu0 0.0
      %1704 = vmatprep.subr.mxu0 0.0
      %1705 = vmatpush2.msra.mxu0 0.0
      %1706 = vmatprep.subr.mxu0 0.0
      %1707 = vmatpush2.msra.mxu0 0.0
      %1708 = vmatprep.subr.mxu0 0.0
      %1709 = vmatpush2.msra.mxu0 0.0
      %1710 = vmatprep.subr.mxu0 0.0
      %1711 = vmatpush2.msra.mxu0 0.0
      %1712 = vmatprep.subr.mxu0 0.0
      %1713 = vmatpush2.msra.mxu0 0.0
      %1714 = vmatprep.subr.mxu0 0.0
      %1715 = vmatpush2.msra.mxu0 0.0
      %1716 = vmatprep.subr.mxu0 0.0
      %1717 = vmatpush2.msra.mxu0 0.0
      %1718 = vmatprep.subr.mxu0 0.0
      %1719 = vmatpush2.msra.mxu0 0.0
      %1720 = vmatprep.subr.mxu0 0.0
      %1721 = vmatpush2.msra.mxu0 0.0
      %1722 = vmatprep.subr.mxu0 0.0
      %1723 = vmatpush2.msra.mxu0 0.0
      %1724 = vmatprep.subr.mxu0 0.0
      %1725 = vmatpush2.msra.mxu0 0.0
      %1726 = vmatprep.subr.mxu0 0.0
      %1727 = vmatpush2.msra.mxu0 0.0
      %1728 = vmatprep.subr.mxu0 0.0
      %1729 = vmatpush2.msra.mxu0 0.0
      %1730 = vmatprep.subr.mxu0 0.0
      %1731 = vmatpush2.msra.mxu0 0.0
      %1732 = vmatprep.subr.mxu0 0.0
      %1733 = vmatpush2.msra.mxu0 0.0
      %1734 = vmatprep.mubr.f32.mxu0 0.0
      %1735 = vmatmul.mubr.f32.gmra.mxu0 %v1668
      %v1736 = vpop.f32.mrf.mxu0
      %v1737 = vadd.f32 %v1665, %v1736
      %v1738 = vpop.f32.mrf.mxu0
      %1739 = vdwg.mxu0
      %v1740 = vrot.slane %v1589, 2
      %v1741 = vrot.slane %v1590, 2
      %v1742 = vsel %vm348, %v1740, %v1741
      %v1743 = vsel %vm203, %v1742, 0
      %1745 = vmatprep.subr.mxu0 0.0
      %1746 = vmatpush1.msra.mxu0 0.0
      %1747 = vmatprep.subr.mxu0 0.0
      %1748 = vmatpush1.msra.mxu0 0.0
      %1749 = vmatprep.subr.mxu0 0.0
      %1750 = vmatpush1.msra.mxu0 0.0
      %1751 = vmatprep.subr.mxu0 0.0
      %1752 = vmatpush1.msra.mxu0 0.0
      %1753 = vmatprep.subr.mxu0 0.0
      %1754 = vmatpush1.msra.mxu0 0.0
      %1755 = vmatprep.subr.mxu0 0.0
      %1756 = vmatpush1.msra.mxu0 0.0
      %1757 = vmatprep.subr.mxu0 0.0
      %1758 = vmatpush1.msra.mxu0 0.0
      %1759 = vmatprep.subr.mxu0 0.0
      %1760 = vmatpush1.msra.mxu0 0.0
      %1761 = vmatprep.subr.mxu0 0.0
      %1762 = vmatpush1.msra.mxu0 0.0
      %1763 = vmatprep.subr.mxu0 0.0
      %1764 = vmatpush1.msra.mxu0 0.0
      %1765 = vmatprep.subr.mxu0 0.0
      %1766 = vmatpush1.msra.mxu0 0.0
      %1767 = vmatprep.subr.mxu0 0.0
      %1768 = vmatpush1.msra.mxu0 %v194
      %1769 = vmatprep.subr.mxu0 0.0
      %1770 = vmatpush1.msra.mxu0 %v193
      %1771 = vmatprep.subr.mxu0 0.0
      %1772 = vmatpush1.msra.mxu0 %v192
      %1773 = vmatprep.subr.mxu0 0.0
      %1774 = vmatpush1.msra.mxu0 %v191
      %1775 = vmatprep.subr.mxu0 0.0
      %1776 = vmatpush1.msra.mxu0 %v190
      %1777 = vmatprep.subr.mxu0 0.0
      %1778 = vmatpush2.msra.mxu0 0.0
      %1779 = vmatprep.subr.mxu0 0.0
      %1780 = vmatpush2.msra.mxu0 0.0
      %1781 = vmatprep.subr.mxu0 0.0
      %1782 = vmatpush2.msra.mxu0 0.0
      %1783 = vmatprep.subr.mxu0 0.0
      %1784 = vmatpush2.msra.mxu0 0.0
      %1785 = vmatprep.subr.mxu0 0.0
      %1786 = vmatpush2.msra.mxu0 0.0
      %1787 = vmatprep.subr.mxu0 0.0
      %1788 = vmatpush2.msra.mxu0 0.0
      %1789 = vmatprep.subr.mxu0 0.0
      %1790 = vmatpush2.msra.mxu0 0.0
      %1791 = vmatprep.subr.mxu0 0.0
      %1792 = vmatpush2.msra.mxu0 0.0
      %1793 = vmatprep.subr.mxu0 0.0
      %1794 = vmatpush2.msra.mxu0 0.0
      %1795 = vmatprep.subr.mxu0 0.0
      %1796 = vmatpush2.msra.mxu0 0.0
      %1797 = vmatprep.subr.mxu0 0.0
      %1798 = vmatpush2.msra.mxu0 0.0
      %1799 = vmatprep.subr.mxu0 0.0
      %1800 = vmatpush2.msra.mxu0 0.0
      %1801 = vmatprep.subr.mxu0 0.0
      %1802 = vmatpush2.msra.mxu0 0.0
      %1803 = vmatprep.subr.mxu0 0.0
      %1804 = vmatpush2.msra.mxu0 0.0
      %1805 = vmatprep.subr.mxu0 0.0
      %1806 = vmatpush2.msra.mxu0 0.0
      %1807 = vmatprep.subr.mxu0 0.0
      %1808 = vmatpush2.msra.mxu0 0.0
      %1809 = vmatprep.mubr.f32.mxu0 0.0
      %1810 = vmatmul.mubr.f32.gmra.mxu0 %v1743
      %v1811 = vpop.f32.mrf.mxu0
      %v1812 = vadd.f32 0.0, %v1811
      %v1813 = vpop.f32.mrf.mxu0
      %1814 = vdwg.mxu0
      %v1815 = vadd.f32 %v1737, %v1812
      %v1816 = vadd.f32 %v1815, %v429
      %s1817 = scalar_lea.vmem %s175, 48
      %1818 = vst [vmem:[%s1817] sm:$0xff] %v1816
      %s1819 = scalar_lea.vmem %s169, 112
      %v1820 = vld [vmem:[%s1819] sm:$0xff]
      %v1821 = vld [vmem:[%s1819 + $0x8] sm:$0x3]
      %v1824 = vrot.slane %v1820, 1
      %v1825 = vrot.slane %v1821, 1
      %v1826 = vsel %vm199, %v1824, %v1825
      %v1827 = vsel %vm203, %v1826, 0
      %1829 = vmatprep.subr.mxu0 0.0
      %1830 = vmatpush1.msra.mxu0 0.0
      %1831 = vmatprep.subr.mxu0 0.0
      %1832 = vmatpush1.msra.mxu0 0.0
      %1833 = vmatprep.subr.mxu0 0.0
      %1834 = vmatpush1.msra.mxu0 0.0
      %1835 = vmatprep.subr.mxu0 0.0
      %1836 = vmatpush1.msra.mxu0 0.0
      %1837 = vmatprep.subr.mxu0 0.0
      %1838 = vmatpush1.msra.mxu0 0.0
      %1839 = vmatprep.subr.mxu0 0.0
      %1840 = vmatpush1.msra.mxu0 0.0
      %1841 = vmatprep.subr.mxu0 0.0
      %1842 = vmatpush1.msra.mxu0 0.0
      %1843 = vmatprep.subr.mxu0 0.0
      %1844 = vmatpush1.msra.mxu0 0.0
      %1845 = vmatprep.subr.mxu0 0.0
      %1846 = vmatpush1.msra.mxu0 0.0
      %1847 = vmatprep.subr.mxu0 0.0
      %1848 = vmatpush1.msra.mxu0 0.0
      %1849 = vmatprep.subr.mxu0 0.0
      %1850 = vmatpush1.msra.mxu0 0.0
      %1851 = vmatprep.subr.mxu0 0.0
      %1852 = vmatpush1.msra.mxu0 %v188
      %1853 = vmatprep.subr.mxu0 0.0
      %1854 = vmatpush1.msra.mxu0 %v187
      %1855 = vmatprep.subr.mxu0 0.0
      %1856 = vmatpush1.msra.mxu0 %v186
      %1857 = vmatprep.subr.mxu0 0.0
      %1858 = vmatpush1.msra.mxu0 %v185
      %1859 = vmatprep.subr.mxu0 0.0
      %1860 = vmatpush1.msra.mxu0 %v184
      %1861 = vmatprep.subr.mxu0 0.0
      %1862 = vmatpush2.msra.mxu0 0.0
      %1863 = vmatprep.subr.mxu0 0.0
      %1864 = vmatpush2.msra.mxu0 0.0
      %1865 = vmatprep.subr.mxu0 0.0
      %1866 = vmatpush2.msra.mxu0 0.0
      %1867 = vmatprep.subr.mxu0 0.0
      %1868 = vmatpush2.msra.mxu0 0.0
      %1869 = vmatprep.subr.mxu0 0.0
      %1870 = vmatpush2.msra.mxu0 0.0
      %1871 = vmatprep.subr.mxu0 0.0
      %1872 = vmatpush2.msra.mxu0 0.0
      %1873 = vmatprep.subr.mxu0 0.0
      %1874 = vmatpush2.msra.mxu0 0.0
      %1875 = vmatprep.subr.mxu0 0.0
      %1876 = vmatpush2.msra.mxu0 0.0
      %1877 = vmatprep.subr.mxu0 0.0
      %1878 = vmatpush2.msra.mxu0 0.0
      %1879 = vmatprep.subr.mxu0 0.0
      %1880 = vmatpush2.msra.mxu0 0.0
      %1881 = vmatprep.subr.mxu0 0.0
      %1882 = vmatpush2.msra.mxu0 0.0
      %1883 = vmatprep.subr.mxu0 0.0
      %1884 = vmatpush2.msra.mxu0 0.0
      %1885 = vmatprep.subr.mxu0 0.0
      %1886 = vmatpush2.msra.mxu0 0.0
      %1887 = vmatprep.subr.mxu0 0.0
      %1888 = vmatpush2.msra.mxu0 0.0
      %1889 = vmatprep.subr.mxu0 0.0
      %1890 = vmatpush2.msra.mxu0 0.0
      %1891 = vmatprep.subr.mxu0 0.0
      %1892 = vmatpush2.msra.mxu0 0.0
      %1893 = vmatprep.mubr.f32.mxu0 0.0
      %1894 = vmatmul.mubr.f32.gmra.mxu0 %v1827
      %v1895 = vpop.f32.mrf.mxu0
      %v1896 = vadd.f32 0.0, %v1895
      %v1897 = vpop.f32.mrf.mxu0
      %1898 = vdwg.mxu0
      %v1899 = vsel %vm203, %v1820, 0
      %1901 = vmatprep.subr.mxu0 0.0
      %1902 = vmatpush1.msra.mxu0 0.0
      %1903 = vmatprep.subr.mxu0 0.0
      %1904 = vmatpush1.msra.mxu0 0.0
      %1905 = vmatprep.subr.mxu0 0.0
      %1906 = vmatpush1.msra.mxu0 0.0
      %1907 = vmatprep.subr.mxu0 0.0
      %1908 = vmatpush1.msra.mxu0 0.0
      %1909 = vmatprep.subr.mxu0 0.0
      %1910 = vmatpush1.msra.mxu0 0.0
      %1911 = vmatprep.subr.mxu0 0.0
      %1912 = vmatpush1.msra.mxu0 0.0
      %1913 = vmatprep.subr.mxu0 0.0
      %1914 = vmatpush1.msra.mxu0 0.0
      %1915 = vmatprep.subr.mxu0 0.0
      %1916 = vmatpush1.msra.mxu0 0.0
      %1917 = vmatprep.subr.mxu0 0.0
      %1918 = vmatpush1.msra.mxu0 0.0
      %1919 = vmatprep.subr.mxu0 0.0
      %1920 = vmatpush1.msra.mxu0 0.0
      %1921 = vmatprep.subr.mxu0 0.0
      %1922 = vmatpush1.msra.mxu0 0.0
      %1923 = vmatprep.subr.mxu0 0.0
      %1924 = vmatpush1.msra.mxu0 %v182
      %1925 = vmatprep.subr.mxu0 0.0
      %1926 = vmatpush1.msra.mxu0 %v181
      %1927 = vmatprep.subr.mxu0 0.0
      %1928 = vmatpush1.msra.mxu0 %v180
      %1929 = vmatprep.subr.mxu0 0.0
      %1930 = vmatpush1.msra.mxu0 %v179
      %1931 = vmatprep.subr.mxu0 0.0
      %1932 = vmatpush1.msra.mxu0 %v178
      %1933 = vmatprep.subr.mxu0 0.0
      %1934 = vmatpush2.msra.mxu0 0.0
      %1935 = vmatprep.subr.mxu0 0.0
      %1936 = vmatpush2.msra.mxu0 0.0
      %1937 = vmatprep.subr.mxu0 0.0
      %1938 = vmatpush2.msra.mxu0 0.0
      %1939 = vmatprep.subr.mxu0 0.0
      %1940 = vmatpush2.msra.mxu0 0.0
      %1941 = vmatprep.subr.mxu0 0.0
      %1942 = vmatpush2.msra.mxu0 0.0
      %1943 = vmatprep.subr.mxu0 0.0
      %1944 = vmatpush2.msra.mxu0 0.0
      %1945 = vmatprep.subr.mxu0 0.0
      %1946 = vmatpush2.msra.mxu0 0.0
      %1947 = vmatprep.subr.mxu0 0.0
      %1948 = vmatpush2.msra.mxu0 0.0
      %1949 = vmatprep.subr.mxu0 0.0
      %1950 = vmatpush2.msra.mxu0 0.0
      %1951 = vmatprep.subr.mxu0 0.0
      %1952 = vmatpush2.msra.mxu0 0.0
      %1953 = vmatprep.subr.mxu0 0.0
      %1954 = vmatpush2.msra.mxu0 0.0
      %1955 = vmatprep.subr.mxu0 0.0
      %1956 = vmatpush2.msra.mxu0 0.0
      %1957 = vmatprep.subr.mxu0 0.0
      %1958 = vmatpush2.msra.mxu0 0.0
      %1959 = vmatprep.subr.mxu0 0.0
      %1960 = vmatpush2.msra.mxu0 0.0
      %1961 = vmatprep.subr.mxu0 0.0
      %1962 = vmatpush2.msra.mxu0 0.0
      %1963 = vmatprep.subr.mxu0 0.0
      %1964 = vmatpush2.msra.mxu0 0.0
      %1965 = vmatprep.mubr.f32.mxu0 0.0
      %1966 = vmatmul.mubr.f32.gmra.mxu0 %v1899
      %v1967 = vpop.f32.mrf.mxu0
      %v1968 = vadd.f32 %v1896, %v1967
      %v1969 = vpop.f32.mrf.mxu0
      %1970 = vdwg.mxu0
      %v1971 = vrot.slane %v1820, 2
      %v1972 = vrot.slane %v1821, 2
      %v1973 = vsel %vm348, %v1971, %v1972
      %v1974 = vsel %vm203, %v1973, 0
      %1976 = vmatprep.subr.mxu0 0.0
      %1977 = vmatpush1.msra.mxu0 0.0
      %1978 = vmatprep.subr.mxu0 0.0
      %1979 = vmatpush1.msra.mxu0 0.0
      %1980 = vmatprep.subr.mxu0 0.0
      %1981 = vmatpush1.msra.mxu0 0.0
      %1982 = vmatprep.subr.mxu0 0.0
      %1983 = vmatpush1.msra.mxu0 0.0
      %1984 = vmatprep.subr.mxu0 0.0
      %1985 = vmatpush1.msra.mxu0 0.0
      %1986 = vmatprep.subr.mxu0 0.0
      %1987 = vmatpush1.msra.mxu0 0.0
      %1988 = vmatprep.subr.mxu0 0.0
      %1989 = vmatpush1.msra.mxu0 0.0
      %1990 = vmatprep.subr.mxu0 0.0
      %1991 = vmatpush1.msra.mxu0 0.0
      %1992 = vmatprep.subr.mxu0 0.0
      %1993 = vmatpush1.msra.mxu0 0.0
      %1994 = vmatprep.subr.mxu0 0.0
      %1995 = vmatpush1.msra.mxu0 0.0
      %1996 = vmatprep.subr.mxu0 0.0
      %1997 = vmatpush1.msra.mxu0 0.0
      %1998 = vmatprep.subr.mxu0 0.0
      %1999 = vmatpush1.msra.mxu0 %v194
      %2000 = vmatprep.subr.mxu0 0.0
      %2001 = vmatpush1.msra.mxu0 %v193
      %2002 = vmatprep.subr.mxu0 0.0
      %2003 = vmatpush1.msra.mxu0 %v192
      %2004 = vmatprep.subr.mxu0 0.0
      %2005 = vmatpush1.msra.mxu0 %v191
      %2006 = vmatprep.subr.mxu0 0.0
      %2007 = vmatpush1.msra.mxu0 %v190
      %2008 = vmatprep.subr.mxu0 0.0
      %2009 = vmatpush2.msra.mxu0 0.0
      %2010 = vmatprep.subr.mxu0 0.0
      %2011 = vmatpush2.msra.mxu0 0.0
      %2012 = vmatprep.subr.mxu0 0.0
      %2013 = vmatpush2.msra.mxu0 0.0
      %2014 = vmatprep.subr.mxu0 0.0
      %2015 = vmatpush2.msra.mxu0 0.0
      %2016 = vmatprep.subr.mxu0 0.0
      %2017 = vmatpush2.msra.mxu0 0.0
      %2018 = vmatprep.subr.mxu0 0.0
      %2019 = vmatpush2.msra.mxu0 0.0
      %2020 = vmatprep.subr.mxu0 0.0
      %2021 = vmatpush2.msra.mxu0 0.0
      %2022 = vmatprep.subr.mxu0 0.0
      %2023 = vmatpush2.msra.mxu0 0.0
      %2024 = vmatprep.subr.mxu0 0.0
      %2025 = vmatpush2.msra.mxu0 0.0
      %2026 = vmatprep.subr.mxu0 0.0
      %2027 = vmatpush2.msra.mxu0 0.0
      %2028 = vmatprep.subr.mxu0 0.0
      %2029 = vmatpush2.msra.mxu0 0.0
      %2030 = vmatprep.subr.mxu0 0.0
      %2031 = vmatpush2.msra.mxu0 0.0
      %2032 = vmatprep.subr.mxu0 0.0
      %2033 = vmatpush2.msra.mxu0 0.0
      %2034 = vmatprep.subr.mxu0 0.0
      %2035 = vmatpush2.msra.mxu0 0.0
      %2036 = vmatprep.subr.mxu0 0.0
      %2037 = vmatpush2.msra.mxu0 0.0
      %2038 = vmatprep.subr.mxu0 0.0
      %2039 = vmatpush2.msra.mxu0 0.0
      %2040 = vmatprep.mubr.f32.mxu0 0.0
      %2041 = vmatmul.mubr.f32.gmra.mxu0 %v1974
      %v2042 = vpop.f32.mrf.mxu0
      %v2043 = vadd.f32 0.0, %v2042
      %v2044 = vpop.f32.mrf.mxu0
      %2045 = vdwg.mxu0
      %v2046 = vadd.f32 %v1968, %v2043
      %v2047 = vadd.f32 %v2046, %v429
      %s2048 = scalar_lea.vmem %s175, 56
      %2049 = vst [vmem:[%s2048] sm:$0xff] %v2047
      %s2050 = smul.u32 8, %s14
      %p2051 = scmp.lt.s32.totalorder %s2050, 23
      %s2052 = scalar_select %p2051, %s2050, 23
      %s2053 = smul.addr %s2052, 8
      %s2054 = scalar_lea.vmem %s3, %s2053
      // Predicated region
      $region33: #{_forward_impl.1} parent=31 // pred_check
        %p2055 = pneg %p100
      $region34: #{_forward_impl.1} parent=31 // pred_check_branch
        %2057 = sbr.rel (%p2055) target = $region36
      $region35: #{_forward_impl.1} parent=31 // pred_region
        %s2058 = smul.u32 8, %s14
      $region36: #{_forward_impl.1} parent=31 // pred_fallthru
        _
    $region32: #{_forward_impl.1} parent=5 // pred_fallthru
      _
    %p2059 = scmp.le.s32.totalorder 2, %s9
    // Predicated region
    $region37: #{_forward_impl.1} parent=5 // pred_check
      %p2060 = pneg %p2059
    $region38: #{_forward_impl.1} parent=5 // pred_check_branch
      %2062 = sbr.rel (%p2060) target = $region40
    $region39: #{_forward_impl.1} parent=5 // pred_region
      %s2063 = ssub.s32 %s9, 2
      // Predicated region
      $region41: #{_forward_impl.1} parent=39 // pred_check
        %p2064 = pneg %p106
      $region42: #{_forward_impl.1} parent=39 // pred_check_branch
        %2066 = sbr.rel (%p2064) target = $region44
      $region43: #{_forward_impl.1} parent=39 // pred_region
        %s2067 = smul.u32 8, %s15
        %p2068 = scmp.lt.s32.totalorder %s2067, 23
        %s2069 = scalar_select %p2068, %s2067, 23
        %s2070 = smul.addr %s2069, 8
        %s2071 = scalar_lea.vmem %s3, %s2070
      $region44: #{_forward_impl.1} parent=39 // pred_fallthru
        _
    $region40: #{_forward_impl.1} parent=5 // pred_fallthru
      _
  $region6: #{_forward_impl.1} parent=0 // loop_footer
    %s13 = sadd.s32 1, %s9
  $region7: #{_forward_impl.1} parent=0 // loop_footer_branch
    %8 = sbr.rel target = $region3
  $region8: #{_forward_impl.1} parent=0 // loop_exit
    _

</llo_original>
